<compile_context>
chip_gen: v6e
topology: v6e:2x2x1
jax: 0.10.0
libtpu: 0.0.40
codegen_flags: <defaults>
</compile_context>

<pallas_src>
import math
import numpy as np
import jax
import jax.numpy as jnp
from jax.experimental import pallas as pl
from jax.experimental.pallas import tpu as pltpu

# ----- constants from Layer4.__init__ -----
FS = 64          # sampling frequency
NS = 2           # pyramid stages
NO = 4           # orientations
N_IM = 16        # patch side -> 256 pixels per patch
HS = 0.24        # spatial sigma (Hs_ini)
GAMMA = 0.6      # g
BIAS = 500.0     # b

# =====================================================================
# Pure-Python / numpy parameter construction (glue, runs once at setup)
# =====================================================================

def build_ind(N, ns, no):
    """Band shapes of SteerableWavelet(stages=ns, order=no-1) on an NxN image."""
    ind = [[N, N]]                               # highpass residual
    for s in range(ns):
        sz = N // (2 ** s)
        ind += [[sz, sz]] * no                   # oriented bands at scale s+1
    ind += [[N // (2 ** ns), N // (2 ** ns)]]    # lowpass residual
    return ind


def coord(pos, Nb):
    p = Nb[0]
    x0 = math.ceil(pos / p)
    x1 = math.ceil(pos - (x0 - 1) * p)
    return [x0, x1]


def pyr_band_indices(ind, band):
    start = sum(ind[i][0] * ind[i][1] for i in range(band))
    return np.arange(start, start + ind[band][0] * ind[band][1])


def coor_s_pyr(p, ind):
    num_bands = len([s for s in ind if s == ind[0]]) - 1
    num_scales = int((len(ind) - 2) / num_bands)
    di = [ind[i + 1][0] - ind[i][0] for i in range(len(ind) - 1)]
    n = [i for i in range(len(di)) if di[i] != 0]
    num_or = n[0]
    band = 0
    pp = np.array([], dtype=np.int64)
    for i in range(len(ind)):
        indices = pyr_band_indices(ind, i)
        pp = np.where(indices - p == 0)[0]
        if pp.size == 0:
            band += 1
        else:
            break
    scale = math.floor(band / num_or) + int(abs(band / num_or - math.floor(band / num_or)) > 0.0)
    orientation = 0
    if 0 < scale <= num_scales:
        orientation = num_or - (num_or * scale - band)
    co = coord(int(pp[0]) + 1, ind[band])
    return [scale, orientation, co[1], co[0]], band


def kernel_s_wavelet_spatial(ind, fs, sigmas_x):
    """Exact numpy translation of the PyTorch helper (builds the dense H)."""
    n_sub = len(ind)
    no_ = 0
    while ind[0][0] == ind[no_ + 1][0]:
        no_ += 1
    ns_ = (n_sub - 2) / no_
    d = sum(a * b for a, b in ind)
    domainS = np.zeros((d, 6), dtype=np.float64)
    for i in range(d):
        coords, _band = coor_s_pyr(i, ind)
        e = coords[0]
        if e == 0:
            f = fs / 2 + fs / 4 * (math.sqrt(2) - 1)
            o = 45.0
            domainS[i] = [coords[3] / fs, coords[2] / fs,
                          f * math.cos(o * math.pi / 180), f * math.sin(o * math.pi / 180), e, 0.0]
        elif 0 < e < ns_ + 1:
            f = fs / 2 ** (e + 1) + 0.5 * (fs / 2 ** e - fs / 2 ** (e + 1))
            o = 180.0 * (coords[1] - 1) / no_
            domainS[i] = [2 ** (e - 1) * coords[3] / fs, 2 ** (e - 1) * coords[2] / fs,
                          f * math.cos(o * math.pi / 180), f * math.sin(o * math.pi / 180), e, o]
        else:
            domainS[i] = [2 ** (e - 1) * coords[3] / fs, 2 ** (e - 1) * coords[2] / fs,
                          0.0, 0.0, e, 0.0]

    Hx = np.eye(d, dtype=np.float64)
    sx2 = sigmas_x[0] ** 2
    for nbandf in range(n_sub):
        indi = pyr_band_indices(ind, nbandf)
        Lb = len(indi)
        dx = domainS[indi, 0]
        dy = domainS[indi, 1]
        x = np.tile(dx[None, :], (Lb, 1))
        y = np.tile(dy[None, :], (Lb, 1))
        xp = np.tile(dx[None, :], (Lb, 1)).T
        yp = np.tile(dy[None, :], (Lb, 1)).T
        xpp = dx.reshape(tuple(ind[nbandf])).T
        ypp = dy.reshape(tuple(ind[nbandf])).T
        dxp = xpp[0, 1] - xpp[0, 0]
        dyp = ypp[1, 0] - ypp[0, 0]
        delta = (x - xp) ** 2 + (y - yp) ** 2
        res = dxp * dyp * (1.0 / (2 * math.pi * sx2)) * np.exp(-delta / (2 * sx2))
        Hx[np.ix_(indi, indi)] = res
    return Hx.astype(np.float32)


def make_L(d, npix, key):
    # TODO(synk): expert_models.SteerableWavelet is not available, so the linearized pyramid
    # operator L is a deterministic synthetic stand-in with the correct (d, N*N) shape.
    return jax.random.normal(key, (d, npix), dtype=jnp.float32) / np.sqrt(npix).astype(np.float32)


# =====================================================================
# Static band-structure constants (from the module's pyramid geometry)
# =====================================================================
IND = build_ind(N_IM, NS, NO)
BAND_SIZES = [a * b for a, b in IND]            # [256]*5 + [64]*4 + [16]
D = sum(BAND_SIZES)                             # 1552
NPIX = N_IM * N_IM                              # 256 pixels per patch
BLK = 256                                       # lane-aligned column-block width
N_BLK = 7                                       # 5 big bands + merged 4x64 + padded lowpass
D_PAD = N_BLK * BLK                             # 1792 = 14*128 -> unmasked lane-dense stores
BIG_OFF = 5 * BLK                               # 1280: start of the four 64-wide bands
MID_OFF = BIG_OFF + BLK                         # 1536: start of the 16-wide lowpass band


def pack_H_blocks(H_dense):
    """Extract the band-block-diagonal content of H as 7 x (256,256) blocks.

    Blocks are stored TRANSPOSED so the kernel's right-multiplication
    e^T @ blk equals (H @ e)^T without relying on H's symmetry.
    Block 5 merges the four 64-wide oriented bands (off-band entries are 0),
    block 6 is the 16-wide lowpass band zero-padded to 256 (zero pad rows/cols
    keep the denominator at b=500 for padded columns, whose e is 0 anyway)."""
    offs = np.cumsum([0] + BAND_SIZES)
    # sanity: H really is block-diagonal on the pyramid bands
    H_rec = np.zeros_like(H_dense)
    for i in range(len(BAND_SIZES)):
        lo, hi = offs[i], offs[i + 1]
        H_rec[lo:hi, lo:hi] = H_dense[lo:hi, lo:hi]
    assert np.array_equal(H_rec, H_dense), "H is not band-block-diagonal as assumed"

    Hb = np.zeros((N_BLK, BLK, BLK), dtype=np.float32)
    for i in range(5):                                                  # big 256-wide bands
        Hb[i] = H_dense[i * BLK:(i + 1) * BLK, i * BLK:(i + 1) * BLK].T
    Hb[5] = H_dense[BIG_OFF:MID_OFF, BIG_OFF:MID_OFF].T                 # 4 x (64x64) bands
    tail = D - MID_OFF                                                  # 16
    Hb[6, :tail, :tail] = H_dense[MID_OFF:D, MID_OFF:D].T               # lowpass, zero-padded
    return jnp.asarray(Hb, dtype=jnp.bfloat16)


# =====================================================================
# Fused Pallas kernel: per 256-wide band block of the pyramid
# =====================================================================

def layer4_block_kernel(xT_ref, LT_ref, Hb_ref, yy_ref, xim_ref):
    # (1) Steerable-pyramid analysis for this column block, lane-dense:
    #     yy^T[:, blk] = x^T @ L^T[:, blk]   (bf16 operands, f32 MXU accumulation)
    yyT = jnp.dot(xT_ref[...], LT_ref[...], preferred_element_type=jnp.float32)
    yy_ref[...] = yyT

    # (2) e = |yy|**gamma with an explicit zero guard (exp(g*log(0)) resolves to 0, but the
    #     guard keeps the chain NaN-safe under any future reordering), sign folded via select.
    absy = jnp.abs(yyT)
    e = jnp.where(absy > 0.0,
                  jnp.exp(GAMMA * jnp.log(jnp.maximum(absy, 1e-30))),
                  0.0)
    num = jnp.where(yyT < 0.0, -e, e)               # == sign(yy) * e, no divide/sign chain

    # (3) Divisive normalization using H's block-diagonal structure:
    #     denom^T[:, blk] = b + e^T[:, blk] @ H_blk^T   (block passed pre-transposed).
    #     bf16 e is fine here: denom is dominated by b = 500.
    den = BIAS + jnp.dot(e.astype(jnp.bfloat16), Hb_ref[...],
                         preferred_element_type=jnp.float32)
    xim_ref[...] = num * pl.reciprocal(den, approx=True)


def layer4_forward(x, LT_pad, Hb):
    """x: (N*N, Npatches) f32;  LT_pad: (N*N, D_PAD) bf16;  Hb: (N_BLK, 256, 256) bf16.
    Returns (yy, xim) in the module's (d, Npatches) orientation."""
    npix, P = x.shape
    assert npix == NPIX and LT_pad.shape == (NPIX, D_PAD) and Hb.shape == (N_BLK, BLK, BLK)

    # Patch tile: >=128 LHS rows keeps the MXU rows busy (v5e MXU is 4x128^2);
    # tiny P falls back to one sublane-aligned tile.
    P8 = -(-P // 8) * 8
    TP = 128 if P8 >= 128 else P8
    P_pad = -(-P // TP) * TP

    # Lane-dense (patches, pixels) layout; patch-pad rows MUST stay zero so that
    # yy = 0 -> e = 0 -> xim = 0 for them (they are sliced off below).
    xT = jnp.transpose(x).astype(jnp.bfloat16)
    if P_pad != P:
        xT = jnp.pad(xT, ((0, P_pad - P), (0, 0)))

    n_pt = P_pad // TP
    cost = pl.CostEstimate(
        flops=2 * P_pad * D_PAD * (NPIX + BLK),
        transcendentals=3 * P_pad * D_PAD,                      # log, exp, reciprocal
        bytes_accessed=(2 * P_pad * NPIX + 2 * NPIX * D_PAD +   # xT, LT (bf16)
                        2 * N_BLK * BLK * BLK +                 # H blocks (bf16)
                        8 * P_pad * D_PAD))                     # yy + xim (f32)

    yyT, ximT = pl.pallas_call(
        layer4_block_kernel,
        out_shape=(jax.ShapeDtypeStruct((P_pad, D_PAD), jnp.float32),
                   jax.ShapeDtypeStruct((P_pad, D_PAD), jnp.float32)),
        grid=(n_pt, N_BLK),
        in_specs=[
            pl.BlockSpec((TP, NPIX), lambda p, j: (p, 0)),          # x^T (constant over j)
            pl.BlockSpec((NPIX, BLK), lambda p, j: (0, j)),         # L^T column block
            pl.BlockSpec((None, BLK, BLK), lambda p, j: (j, 0, 0)),  # H band block (squeezed)
        ],
        out_specs=(pl.BlockSpec((TP, BLK), lambda p, j: (p, j)),
                   pl.BlockSpec((TP, BLK), lambda p, j: (p, j))),
        compiler_params=pltpu.CompilerParams(
            dimension_semantics=("parallel", "parallel"),
            vmem_limit_bytes=32 * 1024 * 1024),
        cost_estimate=cost,
    )(xT, LT_pad, Hb)

    # Back to the module's (d, Npatches) orientation.  NOTE: these transposes are separate
    # XLA ops (one HBM round trip each); drop them if downstream can consume (Npatches, d).
    yy = jnp.transpose(yyT[:P, :D])
    xim = jnp.transpose(ximT[:P, :D])
    return yy, xim


# =====================================================================
if __name__ == "__main__":
    H_dense = kernel_s_wavelet_spatial(IND, FS, [HS])      # (d, d) f32, band-block-diagonal
    Hb = pack_H_blocks(H_dense)                             # (7, 256, 256) bf16

    key = jax.random.PRNGKey(0)
    kL, kx = jax.random.split(key)
    L = make_L(D, NPIX, kL)                                 # (1552, 256) f32
    # Lane-dense weight layout, zero-padded to D_PAD columns, bf16 (halves the dominant
    # DMA stream and keeps the analysis matmul single-pass on the MXU).
    LT_pad = jnp.pad(jnp.transpose(L), ((0, 0), (0, D_PAD - D))).astype(jnp.bfloat16)

    Npatches = 128                                          # >=128 -> full MXU LHS rows
    x = jax.random.normal(kx, (NPIX, Npatches), dtype=jnp.float32)

    fwd = jax.jit(layer4_forward)
    yy, xim = fwd(x, LT_pad, Hb)
    jax.block_until_ready((yy, xim))

    # ---- correctness checks ----
    xn = np.asarray(x, np.float64)
    Ln = np.asarray(L, np.float64)
    Hn = np.asarray(H_dense, np.float64)
    yy_np = np.asarray(yy, np.float64)
    xim_np = np.asarray(xim, np.float64)

    # (1) End-to-end check against the exact f32-parameter reference; tolerances absorb the
    #     deliberate bf16 rounding of L / x / H (which the module itself does not have).
    yy_ref = Ln @ xn
    e_ref = np.abs(yy_ref) ** GAMMA
    xim_ref = np.sign(yy_ref) * e_ref / (BIAS + Hn @ e_ref)
    np.testing.assert_allclose(yy_np, yy_ref, rtol=2e-2, atol=2e-2)
    np.testing.assert_allclose(xim_np, xim_ref, rtol=2e-2, atol=5e-4)

    # (2) Tight check of the divisive-normalization path (bf16 H, bf16 e operand, approx
    #     reciprocal) against the kernel's own yy, isolating it from analysis rounding.
    e_k = np.abs(yy_np) ** GAMMA
    xim_k = np.sign(yy_np) * e_k / (BIAS + Hn @ e_k)
    np.testing.assert_allclose(xim_np, xim_k, rtol=5e-3, atol=1e-6)

    print("KERNEL_OK")
</pallas_src>

<mosaic_0001>
module attributes {stable_mosaic.version = 11 : i64} {
  func.func @layer4_block_kernel(%arg0: i32, %arg1: i32, %arg2: memref<128x256xbf16, #tpu.memory_space<vmem>>, %arg3: memref<256x256xbf16, #tpu.memory_space<vmem>>, %arg4: memref<1x256x256xbf16, #tpu.memory_space<vmem>>, %arg5: memref<128x256xf32, #tpu.memory_space<vmem>>, %arg6: memref<128x256xf32, #tpu.memory_space<vmem>>) attributes {dimension_semantics = [#tpu.dimension_semantics<parallel>, #tpu.dimension_semantics<parallel>], iteration_bounds = array<i64: 1, 7>, scalar_prefetch = 0 : i64, scratch_operands = 0 : i64, tpu.core_type = #tpu.core_type<tc>, window_params = [{transform_indices = @transform_0, window_bounds = array<i64: 128, 256>}, {transform_indices = @transform_1, window_bounds = array<i64: 256, 256>}, {transform_indices = @transform_2, window_bounds = array<i64: 1, 256, 256>}, {transform_indices = @transform_3, window_bounds = array<i64: 128, 256>}, {transform_indices = @transform_4, window_bounds = array<i64: 128, 256>}]} {
    %c0 = arith.constant 0 : index
    %c0_0 = arith.constant 0 : index
    %0 = vector.load %arg2[%c0, %c0_0] : memref<128x256xbf16, #tpu.memory_space<vmem>>, vector<128x256xbf16>
    %c0_1 = arith.constant 0 : index
    %c0_2 = arith.constant 0 : index
    %1 = vector.load %arg3[%c0_1, %c0_2] : memref<256x256xbf16, #tpu.memory_space<vmem>>, vector<256x256xbf16>
    %cst = arith.constant dense<0.000000e+00> : vector<128x256xf32>
    %2 = tpu.matmul %0, %1, %cst {dimension_numbers = #tpu.dot_dimension_numbers<[1], [0], [0], [1], [0, 0, 1, 1], [], []>} : vector<128x256xbf16>, vector<256x256xbf16>, vector<128x256xf32> -> vector<128x256xf32>
    %c0_3 = arith.constant 0 : index
    %c0_4 = arith.constant 0 : index
    %3 = vector.load %arg5[%c0_3, %c0_4] : memref<128x256xf32, #tpu.memory_space<vmem>>, vector<128x256xf32>
    tpu.vector_store %arg5[%c0_3, %c0_4], %2 {strides = array<i32>} : memref<128x256xf32, #tpu.memory_space<vmem>>, vector<128x256xf32>,
    %4 = math.absf %2 : vector<128x256xf32>
    %cst_5 = arith.constant 0.000000e+00 : f32
    %5 = vector.broadcast %cst_5 : f32 to vector<128x256xf32>
    %6 = arith.cmpf ogt, %4, %5 : vector<128x256xf32>
    %cst_6 = arith.constant 1.000000e-30 : f32
    %7 = vector.broadcast %cst_6 : f32 to vector<128x256xf32>
    %8 = arith.maximumf %4, %7 : vector<128x256xf32>
    %9 = math.log %8 : vector<128x256xf32>
    %cst_7 = arith.constant 6.000000e-01 : f32
    %10 = vector.broadcast %cst_7 : f32 to vector<128x256xf32>
    %11 = arith.mulf %10, %9 : vector<128x256xf32>
    %12 = math.exp %11 : vector<128x256xf32>
    %cst_8 = arith.constant 0.000000e+00 : f32
    %13 = vector.broadcast %cst_8 : f32 to vector<128x256xf32>
    %14 = arith.select %6, %12, %13 : vector<128x256xi1>, vector<128x256xf32>
    %cst_9 = arith.constant 0.000000e+00 : f32
    %15 = vector.broadcast %cst_9 : f32 to vector<128x256xf32>
    %16 = arith.cmpf olt, %2, %15 : vector<128x256xf32>
    %cst_10 = arith.constant 0.000000e+00 : f32
    %17 = vector.broadcast %cst_10 : f32 to vector<128x256xf32>
    %18 = arith.subf %17, %14 : vector<128x256xf32>
    %19 = arith.select %16, %18, %14 : vector<128x256xi1>, vector<128x256xf32>
    %20 = arith.truncf %14 : vector<128x256xf32> to vector<128x256xbf16>
    %c0_11 = arith.constant 0 : index
    %c0_12 = arith.constant 0 : index
    %c0_13 = arith.constant 0 : index
    %21 = vector.load %arg4[%c0_11, %c0_12, %c0_13] : memref<1x256x256xbf16, #tpu.memory_space<vmem>>, vector<1x256x256xbf16>
    %22 = vector.shape_cast %21 : vector<1x256x256xbf16> to vector<256x256xbf16>
    %cst_14 = arith.constant dense<0.000000e+00> : vector<128x256xf32>
    %23 = tpu.matmul %20, %22, %cst_14 {dimension_numbers = #tpu.dot_dimension_numbers<[1], [0], [0], [1], [0, 0, 1, 1], [], []>} : vector<128x256xbf16>, vector<256x256xbf16>, vector<128x256xf32> -> vector<128x256xf32>
    %cst_15 = arith.constant 5.000000e+02 : f32
    %24 = vector.broadcast %cst_15 : f32 to vector<128x256xf32>
    %25 = arith.addf %24, %23 : vector<128x256xf32>
    %26 = tpu.reciprocal %25 {approx = true} : vector<128x256xf32> -> vector<128x256xf32>
    %27 = arith.mulf %19, %26 : vector<128x256xf32>
    %c0_16 = arith.constant 0 : index
    %c0_17 = arith.constant 0 : index
    %28 = vector.load %arg6[%c0_16, %c0_17] : memref<128x256xf32, #tpu.memory_space<vmem>>, vector<128x256xf32>
    tpu.vector_store %arg6[%c0_16, %c0_17], %27 {strides = array<i32>} : memref<128x256xf32, #tpu.memory_space<vmem>>, vector<128x256xf32>,
    return
  }
  func.func @transform_0(%arg0: i32, %arg1: i32) -> (i32, i32) {
    %c0_i32 = arith.constant 0 : i32
    %c0_i32_0 = arith.constant 0 : i32
    return %arg0, %c0_i32 : i32, i32
  }
  func.func @transform_1(%arg0: i32, %arg1: i32) -> (i32, i32) {
    %c0_i32 = arith.constant 0 : i32
    %c0_i32_0 = arith.constant 0 : i32
    return %c0_i32, %arg1 : i32, i32
  }
  func.func @transform_2(%arg0: i32, %arg1: i32) -> (i32, i32, i32) {
    %c0_i32 = arith.constant 0 : i32
    %c0_i32_0 = arith.constant 0 : i32
    %c0_i32_1 = arith.constant 0 : i32
    return %arg1, %c0_i32, %c0_i32_0 : i32, i32, i32
  }
  func.func @transform_3(%arg0: i32, %arg1: i32) -> (i32, i32) {
    %c0_i32 = arith.constant 0 : i32
    return %arg0, %arg1 : i32, i32
  }
  func.func @transform_4(%arg0: i32, %arg1: i32) -> (i32, i32) {
    %c0_i32 = arith.constant 0 : i32
    return %arg0, %arg1 : i32, i32
  }
}

</mosaic_0001>

<llo_original>
// kernel: layer4_forward.1
$region0: #{layer4_forward.1}
  #allocation0 [shape = 'u32[]', space=smem, size = 0x4, offset = 0x4, fixed_abs, tag = 'smem constant byte address 0x4 - core index']
  #allocation1 [shape = 'u32[144,128]{1,0:T(1,128)}', space=vmem, size = 0x12000, scoped, tag = 'internal scratch']
  %s0 = inlined_call_operand.vmem [shape: bf16[128,256], index: 0, kind: input, shape index: {}]
  %s1 = inlined_call_operand.hbm [shape: bf16[256,1792], index: 1, kind: input, shape index: {}]
  %s2 = inlined_call_operand.hbm [shape: bf16[7,256,256], index: 2, kind: input, shape index: {}]
  %s3 = inlined_call_operand.vmem [shape: f32[128,1792], index: 3, kind: output, shape index: {0}]
  %s4 = inlined_call_operand.vmem [shape: f32[128,1792], index: 4, kind: output, shape index: {1}]
  %5 = xla_tuple %s3, %s4
  %s6 = sld [smem:[#allocation0]]
  $region99: #{layer4_forward.1} parent=0
    _
  %s8 = ssub.s32 1, %s6
  %s9 = scalar_select 0, %s8, %s6
  $region1: #{layer4_forward.1} parent=0
    #allocation2 [shape = 'u8[262144]{0}', space=vmem, size = 0x40000, scoped, tag = 'input window, operand 1']
    #allocation3 [shape = 's32[2]{0}', space=sflag, size = 0x8, scoped, tag = 'scoped memory for layer4_forward.1']
    #allocation4 [shape = 'u8[262144]{0}', space=vmem, size = 0x40000, scoped, tag = 'input window, operand 2']
    #allocation5 [shape = 's32[2]{0}', space=sflag, size = 0x8, scoped, tag = 'scoped memory for layer4_forward.1']
    #allocation6 [shape = 'u8[262144]{0}', space=vmem, size = 0x40000, scoped, tag = 'output window, operand 0']
    #allocation7 [shape = 'u8[262144]{0}', space=vmem, size = 0x40000, scoped, tag = 'output window, operand 1']
    %10 = vsyncpa [#allocation3], 0
    %s11 = scalar_lea.sflag [#allocation3], 1
    %12 = vsyncpa %s11, 0
    %13 = vsyncpa [#allocation5], 0
    %s14 = scalar_lea.sflag [#allocation5], 1
    %15 = vsyncpa %s14, 0
    loop: start=0, step=1, limit=9
    $region2: #{layer4_forward.1} parent=1 // loop_pre_header
      _
    $region3: #{layer4_forward.1} parent=1 // loop_header
      %s17 = sphi 0, %s21
      %p18 = scmp.ge.s32.totalorder %s17, 9
      %s24 = sphi 0, %s36
      %s25 = sphi 0, %s32
      %s26 = sphi 0, %s24
      %s27 = sphi 0, %s25
      %s28 = sphi 0, %s26
      %s29 = sphi 0, %s27
      %s39 = sphi 0, %s41
      %s42 = sphi 0, %s39
      %s43 = sphi 0, %s42
      %s59 = sphi 0, %s43
      %s65 = sphi 0, %s67
      %s68 = sphi 0, %s65
      %s69 = sphi 0, %s68
      %s85 = sphi 0, %s69
      %s91 = sphi 0, %s93
      %s94 = sphi 0, %s91
      %s95 = sphi 0, %s94
      %s111 = sphi 0, %s95
      %s119 = sphi 0, %s121
      %s122 = sphi 0, %s119
      %s123 = sphi 0, %s122
      %s139 = sphi 0, %s123
      %s147 = sphi 0, %s149
      %s150 = sphi 0, %s147
      %s151 = sphi 0, %s150
      %s167 = sphi 0, %s151
    $region4: #{layer4_forward.1} parent=1 // loop_header_branch
      %20 = sbr.rel (%p18) target = $region8
    $region5: #{layer4_forward.1} parent=1 // loop_body
      %s22 = ssub.s32 %s17, 1
      %s23 = ssub.s32 %s17, 2
      %s30 = sadd.s32 1, %s25
      %p31 = scmp.ge.s32.totalorder %s30, 7
      %s32 = scalar_select %p31, 0, %s30
      %s33 = sadd.s32 1, %s24
      %s34 = scalar_select %p31, %s33, %s24
      %p35 = scmp.ge.s32.totalorder %s34, 1
      %s36 = scalar_select %p35, 0, %s34
      %s37 = ssub.s32 %s24, %s36
      %p38 = scmp.eq.s32.totalorder %s37, 0
      %s40 = sadd.s32 %s39, 1
      %s41 = scalar_select %p38, %s39, %s40
      %p44 = pneg %p38
      %p45 = scmp.eq.s32.totalorder %s17, 6
      %p46 = por %p44, %p45
      %p47 = scmp.ne.s32.totalorder %s39, %s42
      %p48 = scmp.eq.s32.totalorder %s17, 0
      %p49 = por %p47, %p48
      %p50 = scmp.ne.s32.totalorder %s39, %s42
      %p51 = scmp.eq.s32.totalorder %s22, 6
      %p52 = por %p50, %p51
      %p53 = scmp.ne.s32.totalorder %s42, %s43
      %p54 = scmp.eq.s32.totalorder %s22, 0
      %p55 = por %p53, %p54
      %p56 = scmp.ne.s32.totalorder %s42, %s43
      %p57 = scmp.eq.s32.totalorder %s23, 6
      %p58 = por %p56, %p57
      %p60 = scmp.ne.s32.totalorder %s43, %s59
      %p61 = scmp.eq.s32.totalorder %s23, 0
      %p62 = por %p60, %p61
      %s63 = ssub.s32 %s25, %s32
      %p64 = scmp.eq.s32.totalorder %s63, 0
      %s66 = sadd.s32 %s65, 1
      %s67 = scalar_select %p64, %s65, %s66
      %p70 = pneg %p64
      %p71 = scmp.eq.s32.totalorder %s17, 6
      %p72 = por %p70, %p71
      %p73 = scmp.ne.s32.totalorder %s65, %s68
      %p74 = scmp.eq.s32.totalorder %s17, 0
      %p75 = por %p73, %p74
      %p76 = scmp.ne.s32.totalorder %s65, %s68
      %p77 = scmp.eq.s32.totalorder %s22, 6
      %p78 = por %p76, %p77
      %p79 = scmp.ne.s32.totalorder %s68, %s69
      %p80 = scmp.eq.s32.totalorder %s22, 0
      %p81 = por %p79, %p80
      %p82 = scmp.ne.s32.totalorder %s68, %s69
      %p83 = scmp.eq.s32.totalorder %s23, 6
      %p84 = por %p82, %p83
      %p86 = scmp.ne.s32.totalorder %s69, %s85
      %p87 = scmp.eq.s32.totalorder %s23, 0
      %p88 = por %p86, %p87
      %s89 = ssub.s32 %s25, %s32
      %p90 = scmp.eq.s32.totalorder %s89, 0
      %s92 = sadd.s32 %s91, 1
      %s93 = scalar_select %p90, %s91, %s92
      %p96 = pneg %p90
      %p97 = scmp.eq.s32.totalorder %s17, 6
      %p98 = por %p96, %p97
      %p99 = scmp.ne.s32.totalorder %s91, %s94
      %p100 = scmp.eq.s32.totalorder %s17, 0
      %p101 = por %p99, %p100
      %p102 = scmp.ne.s32.totalorder %s91, %s94
      %p103 = scmp.eq.s32.totalorder %s22, 6
      %p104 = por %p102, %p103
      %p105 = scmp.ne.s32.totalorder %s94, %s95
      %p106 = scmp.eq.s32.totalorder %s22, 0
      %p107 = por %p105, %p106
      %p108 = scmp.ne.s32.totalorder %s94, %s95
      %p109 = scmp.eq.s32.totalorder %s23, 6
      %p110 = por %p108, %p109
      %p112 = scmp.ne.s32.totalorder %s95, %s111
      %p113 = scmp.eq.s32.totalorder %s23, 0
      %p114 = por %p112, %p113
      %s115 = ssub.s32 %s24, %s36
      %s116 = ssub.s32 %s25, %s32
      %s117 = sor.u32 %s115, %s116
      %p118 = scmp.eq.s32.totalorder %s117, 0
      %s120 = sadd.s32 %s119, 1
      %s121 = scalar_select %p118, %s119, %s120
      %p124 = pneg %p118
      %p125 = scmp.eq.s32.totalorder %s17, 6
      %p126 = por %p124, %p125
      %p127 = scmp.ne.s32.totalorder %s119, %s122
      %p128 = scmp.eq.s32.totalorder %s17, 0
      %p129 = por %p127, %p128
      %p130 = scmp.ne.s32.totalorder %s119, %s122
      %p131 = scmp.eq.s32.totalorder %s22, 6
      %p132 = por %p130, %p131
      %p133 = scmp.ne.s32.totalorder %s122, %s123
      %p134 = scmp.eq.s32.totalorder %s22, 0
      %p135 = por %p133, %p134
      %p136 = scmp.ne.s32.totalorder %s122, %s123
      %p137 = scmp.eq.s32.totalorder %s23, 6
      %p138 = por %p136, %p137
      %p140 = scmp.ne.s32.totalorder %s123, %s139
      %p141 = scmp.eq.s32.totalorder %s23, 0
      %p142 = por %p140, %p141
      %s143 = ssub.s32 %s24, %s36
      %s144 = ssub.s32 %s25, %s32
      %s145 = sor.u32 %s143, %s144
      %p146 = scmp.eq.s32.totalorder %s145, 0
      %s148 = sadd.s32 %s147, 1
      %s149 = scalar_select %p146, %s147, %s148
      %p152 = pneg %p146
      %p153 = scmp.eq.s32.totalorder %s17, 6
      %p154 = por %p152, %p153
      %p155 = scmp.ne.s32.totalorder %s147, %s150
      %p156 = scmp.eq.s32.totalorder %s17, 0
      %p157 = por %p155, %p156
      %p158 = scmp.ne.s32.totalorder %s147, %s150
      %p159 = scmp.eq.s32.totalorder %s22, 6
      %p160 = por %p158, %p159
      %p161 = scmp.ne.s32.totalorder %s150, %s151
      %p162 = scmp.eq.s32.totalorder %s22, 0
      %p163 = por %p161, %p162
      %p164 = scmp.ne.s32.totalorder %s150, %s151
      %p165 = scmp.eq.s32.totalorder %s23, 6
      %p166 = por %p164, %p165
      %p168 = scmp.ne.s32.totalorder %s151, %s167
      %p169 = scmp.eq.s32.totalorder %s23, 0
      %p170 = por %p168, %p169
      %p171 = scmp.le.s32.totalorder 1, %s17
      %p172 = scmp.lt.s32.totalorder %s17, 8
      %p173 = pnand %p171, %p172
      %p174 = pneg %p173
      // Predicated region
      $region9: #{layer4_forward.1} parent=5 // pred_check
        _
      $region10: #{layer4_forward.1} parent=5 // pred_check_branch
        %176 = sbr.rel (%p173) target = $region12
      $region11: #{layer4_forward.1} parent=5 // pred_region
        %s177 = ssub.s32 %s17, 1
        // Predicated region
        $region13: #{layer4_forward.1} parent=11 // pred_check
          %p178 = pneg %p55
        $region14: #{layer4_forward.1} parent=11 // pred_check_branch
          %180 = sbr.rel (%p178) target = $region16
        $region15: #{layer4_forward.1} parent=11 // pred_region
          %s181 = smul.u32 16, %s26
          %p182 = scmp.lt.s32.totalorder %s181, 15
          %s183 = scalar_select %p182, %s181, 15
          %s184 = smul.addr %s183, 2
          %s185 = smul.addr %s184, 4
          %s186 = scalar_lea.vmem %s0, %s185
          %s187 = smul.u32 16, %s26
        $region16: #{layer4_forward.1} parent=11 // pred_fallthru
          _
      $region12: #{layer4_forward.1} parent=5 // pred_fallthru
        _
      %p188 = scmp.lt.s32.totalorder %s17, 7
      // Predicated region
      $region17: #{layer4_forward.1} parent=5 // pred_check
        %p189 = pneg %p188
      $region18: #{layer4_forward.1} parent=5 // pred_check_branch
        %191 = sbr.rel (%p189) target = $region20
      $region19: #{layer4_forward.1} parent=5 // pred_region
        // Predicated region
        $region21: #{layer4_forward.1} parent=19 // pred_check
          %p192 = pneg %p75
        $region22: #{layer4_forward.1} parent=19 // pred_check_branch
          %194 = sbr.rel (%p192) target = $region24
        $region23: #{layer4_forward.1} parent=19 // pred_region
          %s195 = sand.u32 %s65, 1
          %s196 = scalar_lea.sflag [#allocation3], %s195
          %s197 = sand.u32 %s65, 1
          %s198 = smul.addr %s197, 256
          %s199 = scalar_lea.vmem [#allocation2], %s198
          %s200 = smul.u32 2, %s25
          %s202 = ssub.s32 4096, 4096
          %203 = vsyncadd %s196, %s202
          %s204 = smul.addr %s200, 64
          %s205 = scalar_lea.hbm %s1, %s204
          %s206 = sshll.u32 %s199, 4
          %s207 = int_to_ptr.vmem [resolvable:$true] %s206
          %212 = dma.hbm_to_vmem [thread:$0]  %s205, 4096, %s207, %s196, 896, 128, 8
        $region24: #{layer4_forward.1} parent=19 // pred_fallthru
          _
        // Predicated region
        $region25: #{layer4_forward.1} parent=19 // pred_check
          %p213 = pneg %p101
        $region26: #{layer4_forward.1} parent=19 // pred_check_branch
          %215 = sbr.rel (%p213) target = $region28
        $region27: #{layer4_forward.1} parent=19 // pred_region
          %s216 = sand.u32 %s91, 1
          %s217 = scalar_lea.sflag [#allocation5], %s216
          %s218 = sand.u32 %s91, 1
          %s219 = smul.addr %s218, 256
          %s220 = scalar_lea.vmem [#allocation4], %s219
          %s222 = ssub.s32 4096, 4096
          %223 = vsyncadd %s217, %s222
          %s224 = smul.addr %s25, 64
          %s225 = smul.addr %s224, 64
          %s226 = scalar_lea.hbm %s2, %s225
          %s227 = sshll.u32 %s220, 4
          %s228 = int_to_ptr.vmem [resolvable:$true] %s227
          %233 = dma.hbm_to_vmem [thread:$0]  %s226, 4096, %s228, %s217, 128, 128, 8
        $region28: #{layer4_forward.1} parent=19 // pred_fallthru
          _
      $region20: #{layer4_forward.1} parent=5 // pred_fallthru
        _
      %p234 = scmp.le.s32.totalorder 1, %s17
      %p235 = scmp.lt.s32.totalorder %s17, 8
      %p236 = pnand %p234, %p235
      %p237 = pneg %p236
      // Predicated region
      $region29: #{layer4_forward.1} parent=5 // pred_check
        _
      $region30: #{layer4_forward.1} parent=5 // pred_check_branch
        %239 = sbr.rel (%p236) target = $region32
      $region31: #{layer4_forward.1} parent=5 // pred_region
        %s240 = ssub.s32 %s17, 1
        %s241 = sand.u32 %s68, 1
        %s242 = scalar_lea.sflag [#allocation3], %s241
        %s243 = sand.u32 %s68, 1
        %s244 = smul.addr %s243, 256
        %s245 = scalar_lea.vmem [#allocation2], %s244
        // Predicated region
        $region33: #{layer4_forward.1} parent=31 // pred_check
          %p246 = pneg %p81
        $region34: #{layer4_forward.1} parent=31 // pred_check_branch
          %248 = sbr.rel (%p246) target = $region36
        $region35: #{layer4_forward.1} parent=31 // pred_region
          %249 = dma.done %s242, 4096
        $region36: #{layer4_forward.1} parent=31 // pred_fallthru
          _
        %s250 = sand.u32 %s94, 1
        %s251 = scalar_lea.sflag [#allocation5], %s250
        %s252 = sand.u32 %s94, 1
        %s253 = smul.addr %s252, 256
        %s254 = scalar_lea.vmem [#allocation4], %s253
        // Predicated region
        $region37: #{layer4_forward.1} parent=31 // pred_check
          %p255 = pneg %p107
        $region38: #{layer4_forward.1} parent=31 // pred_check_branch
          %257 = sbr.rel (%p255) target = $region40
        $region39: #{layer4_forward.1} parent=31 // pred_region
          %258 = dma.done %s251, 4096
        $region40: #{layer4_forward.1} parent=31 // pred_fallthru
          _
        %s259 = smul.u32 16, %s26
        %p260 = scmp.lt.s32.totalorder %s259, 15
        %s261 = scalar_select %p260, %s259, 15
        %s262 = smul.addr %s261, 2
        %s263 = smul.addr %s262, 4
        %s264 = scalar_lea.vmem %s0, %s263
        %p265 = pneg %p55
        %p266 = pneg %p52
        %s267 = sand.u32 %s68, 1
        %s268 = scalar_lea.sflag [#allocation3], %s267
        %s269 = sand.u32 %s68, 1
        %s270 = smul.addr %s269, 256
        %s271 = scalar_lea.vmem [#allocation2], %s270
        %p272 = pneg %p81
        %p273 = pneg %p78
        %s274 = sand.u32 %s94, 1
        %s275 = scalar_lea.sflag [#allocation5], %s274
        %s276 = sand.u32 %s94, 1
        %s277 = smul.addr %s276, 256
        %s278 = scalar_lea.vmem [#allocation4], %s277
        %p279 = pneg %p107
        %p280 = pneg %p104
        %p281 = pneg %p135
        %p282 = pneg %p132
        %s283 = sand.u32 %s122, 1
        %s284 = sand.u32 %s122, 1
        %s285 = smul.addr %s284, 256
        %s286 = scalar_lea.vmem [#allocation6], %s285
        %p287 = pneg %p163
        %p288 = pneg %p160
        %s289 = sand.u32 %s150, 1
        %s290 = sand.u32 %s150, 1
        %s291 = smul.addr %s290, 256
        %s292 = scalar_lea.vmem [#allocation7], %s291
        %s293 = smul.u32 16, %s26
        %p294 = scmp.lt.s32.totalorder %s293, 15
        %s295 = scalar_select %p294, %s293, 15
        %s296 = smul.addr %s295, 2
        %s297 = smul.addr %s296, 4
        %s298 = scalar_lea.vmem %s0, %s297
        %s299 = smul.u32 16, %s26
        %s300 = smul.u32 2, %s27
        %s301 = smul.u32 16, %s26
        %s302 = smul.u32 2, %s27
        %s303 = smul.u32 16, %s26
        %s304 = smul.u32 2, %s27
        %v305 = vld [vmem:[%s298] sm:$0xff]
        %v306 = vld [vmem:[%s298 + $0x8] sm:$0xff]
        %v307 = vld [vmem:[%s298 + $0x10] sm:$0xff]
        %v308 = vld [vmem:[%s298 + $0x18] sm:$0xff]
        %v309 = vld [vmem:[%s298 + $0x20] sm:$0xff]
        %v310 = vld [vmem:[%s298 + $0x28] sm:$0xff]
        %v311 = vld [vmem:[%s298 + $0x30] sm:$0xff]
        %v312 = vld [vmem:[%s298 + $0x38] sm:$0xff]
        %v313 = vld [vmem:[%s298 + $0x40] sm:$0xff]
        %v314 = vld [vmem:[%s298 + $0x48] sm:$0xff]
        %v315 = vld [vmem:[%s298 + $0x50] sm:$0xff]
        %v316 = vld [vmem:[%s298 + $0x58] sm:$0xff]
        %v317 = vld [vmem:[%s298 + $0x60] sm:$0xff]
        %v318 = vld [vmem:[%s298 + $0x68] sm:$0xff]
        %v319 = vld [vmem:[%s298 + $0x70] sm:$0xff]
        %v320 = vld [vmem:[%s298 + $0x78] sm:$0xff]
        %v321 = vld [vmem:[%s245] sm:$0xff]
        %v322 = vld [vmem:[%s245 + $0x8] sm:$0xff]
        %v323 = vld [vmem:[%s245 + $0x10] sm:$0xff]
        %v324 = vld [vmem:[%s245 + $0x18] sm:$0xff]
        %v325 = vld [vmem:[%s245 + $0x20] sm:$0xff]
        %v326 = vld [vmem:[%s245 + $0x28] sm:$0xff]
        %v327 = vld [vmem:[%s245 + $0x30] sm:$0xff]
        %v328 = vld [vmem:[%s245 + $0x38] sm:$0xff]
        %v329 = vld [vmem:[%s245 + $0x40] sm:$0xff]
        %v330 = vld [vmem:[%s245 + $0x48] sm:$0xff]
        %v331 = vld [vmem:[%s245 + $0x50] sm:$0xff]
        %v332 = vld [vmem:[%s245 + $0x58] sm:$0xff]
        %v333 = vld [vmem:[%s245 + $0x60] sm:$0xff]
        %v334 = vld [vmem:[%s245 + $0x68] sm:$0xff]
        %v335 = vld [vmem:[%s245 + $0x70] sm:$0xff]
        %v336 = vld [vmem:[%s245 + $0x78] sm:$0xff]
        %v337 = vld [vmem:[%s245 + $0x80] sm:$0xff]
        %v338 = vld [vmem:[%s245 + $0x88] sm:$0xff]
        %v339 = vld [vmem:[%s245 + $0x90] sm:$0xff]
        %v340 = vld [vmem:[%s245 + $0x98] sm:$0xff]
        %v341 = vld [vmem:[%s245 + $0xa0] sm:$0xff]
        %v342 = vld [vmem:[%s245 + $0xa8] sm:$0xff]
        %v343 = vld [vmem:[%s245 + $0xb0] sm:$0xff]
        %v344 = vld [vmem:[%s245 + $0xb8] sm:$0xff]
        %v345 = vld [vmem:[%s245 + $0xc0] sm:$0xff]
        %v346 = vld [vmem:[%s245 + $0xc8] sm:$0xff]
        %v347 = vld [vmem:[%s245 + $0xd0] sm:$0xff]
        %v348 = vld [vmem:[%s245 + $0xd8] sm:$0xff]
        %v349 = vld [vmem:[%s245 + $0xe0] sm:$0xff]
        %v350 = vld [vmem:[%s245 + $0xe8] sm:$0xff]
        %v351 = vld [vmem:[%s245 + $0xf0] sm:$0xff]
        %v352 = vld [vmem:[%s245 + $0xf8] sm:$0xff]
        %v369 = vunpack.c.l.b16 %v305
        %v370 = vunpack.c.h.b16 %v305
        %v371 = vunpack.c.l.b16 %v306
        %v372 = vunpack.c.h.b16 %v306
        %v373 = vunpack.c.l.b16 %v307
        %v374 = vunpack.c.h.b16 %v307
        %v375 = vunpack.c.l.b16 %v308
        %v376 = vunpack.c.h.b16 %v308
        %v377 = vunpack.c.l.b16 %v309
        %v378 = vunpack.c.h.b16 %v309
        %v379 = vunpack.c.l.b16 %v310
        %v380 = vunpack.c.h.b16 %v310
        %v381 = vunpack.c.l.b16 %v311
        %v382 = vunpack.c.h.b16 %v311
        %v383 = vunpack.c.l.b16 %v312
        %v384 = vunpack.c.h.b16 %v312
        %v385 = vunpack.c.l.b16 %v313
        %v386 = vunpack.c.h.b16 %v313
        %v387 = vunpack.c.l.b16 %v314
        %v388 = vunpack.c.h.b16 %v314
        %v389 = vunpack.c.l.b16 %v315
        %v390 = vunpack.c.h.b16 %v315
        %v391 = vunpack.c.l.b16 %v316
        %v392 = vunpack.c.h.b16 %v316
        %v393 = vunpack.c.l.b16 %v317
        %v394 = vunpack.c.h.b16 %v317
        %v395 = vunpack.c.l.b16 %v318
        %v396 = vunpack.c.h.b16 %v318
        %v397 = vunpack.c.l.b16 %v319
        %v398 = vunpack.c.h.b16 %v319
        %v399 = vunpack.c.l.b16 %v320
        %v400 = vunpack.c.h.b16 %v320
        %v401 = vpack.c.b16 %v371, %v369
        %v402 = vpack.c.b16 %v372, %v370
        %v403 = vpack.c.b16 %v375, %v373
        %v404 = vpack.c.b16 %v376, %v374
        %v405 = vpack.c.b16 %v379, %v377
        %v406 = vpack.c.b16 %v380, %v378
        %v407 = vpack.c.b16 %v383, %v381
        %v408 = vpack.c.b16 %v384, %v382
        %v409 = vpack.c.b16 %v387, %v385
        %v410 = vpack.c.b16 %v388, %v386
        %v411 = vpack.c.b16 %v391, %v389
        %v412 = vpack.c.b16 %v392, %v390
        %v413 = vpack.c.b16 %v395, %v393
        %v414 = vpack.c.b16 %v396, %v394
        %v415 = vpack.c.b16 %v399, %v397
        %v416 = vpack.c.b16 %v400, %v398
        %v465 = vunpack.c.l.b16 %v321
        %v466 = vunpack.c.h.b16 %v321
        %v467 = vunpack.c.l.b16 %v322
        %v468 = vunpack.c.h.b16 %v322
        %v469 = vunpack.c.l.b16 %v323
        %v470 = vunpack.c.h.b16 %v323
        %v471 = vunpack.c.l.b16 %v324
        %v472 = vunpack.c.h.b16 %v324
        %v473 = vunpack.c.l.b16 %v325
        %v474 = vunpack.c.h.b16 %v325
        %v475 = vunpack.c.l.b16 %v326
        %v476 = vunpack.c.h.b16 %v326
        %v477 = vunpack.c.l.b16 %v327
        %v478 = vunpack.c.h.b16 %v327
        %v479 = vunpack.c.l.b16 %v328
        %v480 = vunpack.c.h.b16 %v328
        %v481 = vunpack.c.l.b16 %v329
        %v482 = vunpack.c.h.b16 %v329
        %v483 = vunpack.c.l.b16 %v330
        %v484 = vunpack.c.h.b16 %v330
        %v485 = vunpack.c.l.b16 %v331
        %v486 = vunpack.c.h.b16 %v331
        %v487 = vunpack.c.l.b16 %v332
        %v488 = vunpack.c.h.b16 %v332
        %v489 = vunpack.c.l.b16 %v333
        %v490 = vunpack.c.h.b16 %v333
        %v491 = vunpack.c.l.b16 %v334
        %v492 = vunpack.c.h.b16 %v334
        %v493 = vunpack.c.l.b16 %v335
        %v494 = vunpack.c.h.b16 %v335
        %v495 = vunpack.c.l.b16 %v336
        %v496 = vunpack.c.h.b16 %v336
        %v497 = vunpack.c.l.b16 %v337
        %v498 = vunpack.c.h.b16 %v337
        %v499 = vunpack.c.l.b16 %v338
        %v500 = vunpack.c.h.b16 %v338
        %v501 = vunpack.c.l.b16 %v339
        %v502 = vunpack.c.h.b16 %v339
        %v503 = vunpack.c.l.b16 %v340
        %v504 = vunpack.c.h.b16 %v340
        %v505 = vunpack.c.l.b16 %v341
        %v506 = vunpack.c.h.b16 %v341
        %v507 = vunpack.c.l.b16 %v342
        %v508 = vunpack.c.h.b16 %v342
        %v509 = vunpack.c.l.b16 %v343
        %v510 = vunpack.c.h.b16 %v343
        %v511 = vunpack.c.l.b16 %v344
        %v512 = vunpack.c.h.b16 %v344
        %v513 = vunpack.c.l.b16 %v345
        %v514 = vunpack.c.h.b16 %v345
        %v515 = vunpack.c.l.b16 %v346
        %v516 = vunpack.c.h.b16 %v346
        %v517 = vunpack.c.l.b16 %v347
        %v518 = vunpack.c.h.b16 %v347
        %v519 = vunpack.c.l.b16 %v348
        %v520 = vunpack.c.h.b16 %v348
        %v521 = vunpack.c.l.b16 %v349
        %v522 = vunpack.c.h.b16 %v349
        %v523 = vunpack.c.l.b16 %v350
        %v524 = vunpack.c.h.b16 %v350
        %v525 = vunpack.c.l.b16 %v351
        %v526 = vunpack.c.h.b16 %v351
        %v527 = vunpack.c.l.b16 %v352
        %v528 = vunpack.c.h.b16 %v352
        %v529 = vpack.c.b16 %v467, %v465
        %v530 = vpack.c.b16 %v468, %v466
        %v531 = vpack.c.b16 %v471, %v469
        %v532 = vpack.c.b16 %v472, %v470
        %v533 = vpack.c.b16 %v475, %v473
        %v534 = vpack.c.b16 %v476, %v474
        %v535 = vpack.c.b16 %v479, %v477
        %v536 = vpack.c.b16 %v480, %v478
        %v537 = vpack.c.b16 %v483, %v481
        %v538 = vpack.c.b16 %v484, %v482
        %v539 = vpack.c.b16 %v487, %v485
        %v540 = vpack.c.b16 %v488, %v486
        %v541 = vpack.c.b16 %v491, %v489
        %v542 = vpack.c.b16 %v492, %v490
        %v543 = vpack.c.b16 %v495, %v493
        %v544 = vpack.c.b16 %v496, %v494
        %v545 = vpack.c.b16 %v499, %v497
        %v546 = vpack.c.b16 %v500, %v498
        %v547 = vpack.c.b16 %v503, %v501
        %v548 = vpack.c.b16 %v504, %v502
        %v549 = vpack.c.b16 %v507, %v505
        %v550 = vpack.c.b16 %v508, %v506
        %v551 = vpack.c.b16 %v511, %v509
        %v552 = vpack.c.b16 %v512, %v510
        %v553 = vpack.c.b16 %v515, %v513
        %v554 = vpack.c.b16 %v516, %v514
        %v555 = vpack.c.b16 %v519, %v517
        %v556 = vpack.c.b16 %v520, %v518
        %v557 = vpack.c.b16 %v523, %v521
        %v558 = vpack.c.b16 %v524, %v522
        %v559 = vpack.c.b16 %v527, %v525
        %v560 = vpack.c.b16 %v528, %v526
        %593 = vmatprep.subr.bf16.mxu0 %v544
        %594 = vmatpush1.bf16.msra.mxu0 %v543
        %595 = vmatprep.subr.bf16.mxu0 %v542
        %596 = vmatpush1.bf16.msra.mxu0 %v541
        %597 = vmatprep.subr.bf16.mxu0 %v540
        %598 = vmatpush1.bf16.msra.mxu0 %v539
        %599 = vmatprep.subr.bf16.mxu0 %v538
        %600 = vmatpush1.bf16.msra.mxu0 %v537
        %601 = vmatprep.subr.bf16.mxu0 %v536
        %602 = vmatpush1.bf16.msra.mxu0 %v535
        %603 = vmatprep.subr.bf16.mxu0 %v534
        %604 = vmatpush1.bf16.msra.mxu0 %v533
        %605 = vmatprep.subr.bf16.mxu0 %v532
        %606 = vmatpush1.bf16.msra.mxu0 %v531
        %607 = vmatprep.subr.bf16.mxu0 %v530
        %608 = vmatpush1.bf16.msra.mxu0 %v529
        %609 = vmatprep.subr.bf16.mxu0 %v560
        %610 = vmatpush2.bf16.msra.mxu0 %v559
        %611 = vmatprep.subr.bf16.mxu0 %v558
        %612 = vmatpush2.bf16.msra.mxu0 %v557
        %613 = vmatprep.subr.bf16.mxu0 %v556
        %614 = vmatpush2.bf16.msra.mxu0 %v555
        %615 = vmatprep.subr.bf16.mxu0 %v554
        %616 = vmatpush2.bf16.msra.mxu0 %v553
        %617 = vmatprep.subr.bf16.mxu0 %v552
        %618 = vmatpush2.bf16.msra.mxu0 %v551
        %619 = vmatprep.subr.bf16.mxu0 %v550
        %620 = vmatpush2.bf16.msra.mxu0 %v549
        %621 = vmatprep.subr.bf16.mxu0 %v548
        %622 = vmatpush2.bf16.msra.mxu0 %v547
        %623 = vmatprep.subr.bf16.mxu0 %v546
        %624 = vmatpush2.bf16.msra.mxu0 %v545
        %625 = vmatprep.mubr.bf16.mxu0 %v402
        %626 = vmatmul.mubr.bf16.gmra.mxu0 %v401
        %v627 = vpop.f32.mrf.mxu0
        %v628 = vadd.f32 0.0, %v627
        %v629 = vpop.f32.mrf.mxu0
        %v630 = vadd.f32 0.0, %v629
        %v631 = vpop.f32.mrf.mxu0
        %v632 = vadd.f32 0.0, %v631
        %v633 = vpop.f32.mrf.mxu0
        %v634 = vadd.f32 0.0, %v633
        %635 = vmatprep.mubr.bf16.mxu0 %v404
        %636 = vmatmul.mubr.bf16.gmra.mxu0 %v403
        %v637 = vpop.f32.mrf.mxu0
        %v638 = vadd.f32 0.0, %v637
        %v639 = vpop.f32.mrf.mxu0
        %v640 = vadd.f32 0.0, %v639
        %v641 = vpop.f32.mrf.mxu0
        %v642 = vadd.f32 0.0, %v641
        %v643 = vpop.f32.mrf.mxu0
        %v644 = vadd.f32 0.0, %v643
        %645 = vmatprep.mubr.bf16.mxu0 %v406
        %646 = vmatmul.mubr.bf16.gmra.mxu0 %v405
        %v647 = vpop.f32.mrf.mxu0
        %v648 = vadd.f32 0.0, %v647
        %v649 = vpop.f32.mrf.mxu0
        %v650 = vadd.f32 0.0, %v649
        %v651 = vpop.f32.mrf.mxu0
        %v652 = vadd.f32 0.0, %v651
        %v653 = vpop.f32.mrf.mxu0
        %v654 = vadd.f32 0.0, %v653
        %655 = vmatprep.mubr.bf16.mxu0 %v408
        %656 = vmatmul.mubr.bf16.gmra.mxu0 %v407
        %v657 = vpop.f32.mrf.mxu0
        %v658 = vadd.f32 0.0, %v657
        %v659 = vpop.f32.mrf.mxu0
        %v660 = vadd.f32 0.0, %v659
        %v661 = vpop.f32.mrf.mxu0
        %v662 = vadd.f32 0.0, %v661
        %v663 = vpop.f32.mrf.mxu0
        %v664 = vadd.f32 0.0, %v663
        %665 = vmatprep.mubr.bf16.mxu0 %v410
        %666 = vmatmul.mubr.bf16.gmra.mxu0 %v409
        %v667 = vpop.f32.mrf.mxu0
        %v668 = vadd.f32 0.0, %v667
        %v669 = vpop.f32.mrf.mxu0
        %v670 = vadd.f32 0.0, %v669
        %v671 = vpop.f32.mrf.mxu0
        %v672 = vadd.f32 0.0, %v671
        %v673 = vpop.f32.mrf.mxu0
        %v674 = vadd.f32 0.0, %v673
        %675 = vmatprep.mubr.bf16.mxu0 %v412
        %676 = vmatmul.mubr.bf16.gmra.mxu0 %v411
        %v677 = vpop.f32.mrf.mxu0
        %v678 = vadd.f32 0.0, %v677
        %v679 = vpop.f32.mrf.mxu0
        %v680 = vadd.f32 0.0, %v679
        %v681 = vpop.f32.mrf.mxu0
        %v682 = vadd.f32 0.0, %v681
        %v683 = vpop.f32.mrf.mxu0
        %v684 = vadd.f32 0.0, %v683
        %685 = vmatprep.mubr.bf16.mxu0 %v414
        %686 = vmatmul.mubr.bf16.gmra.mxu0 %v413
        %v687 = vpop.f32.mrf.mxu0
        %v688 = vadd.f32 0.0, %v687
        %v689 = vpop.f32.mrf.mxu0
        %v690 = vadd.f32 0.0, %v689
        %v691 = vpop.f32.mrf.mxu0
        %v692 = vadd.f32 0.0, %v691
        %v693 = vpop.f32.mrf.mxu0
        %v694 = vadd.f32 0.0, %v693
        %695 = vmatprep.mubr.bf16.mxu0 %v416
        %696 = vmatmul.mubr.bf16.gmra.mxu0 %v415
        %v697 = vpop.f32.mrf.mxu0
        %v698 = vadd.f32 0.0, %v697
        %v699 = vpop.f32.mrf.mxu0
        %v700 = vadd.f32 0.0, %v699
        %v701 = vpop.f32.mrf.mxu0
        %v702 = vadd.f32 0.0, %v701
        %v703 = vpop.f32.mrf.mxu0
        %v704 = vadd.f32 0.0, %v703
        %705 = vdwg.mxu0
        %706 = vst [vmem:[%s286] sm:$0xff] %v628
        %707 = vst [vmem:[%s286 + $0x8] sm:$0xff] %v630
        %708 = vst [vmem:[%s286 + $0x10] sm:$0xff] %v632
        %709 = vst [vmem:[%s286 + $0x18] sm:$0xff] %v634
        %710 = vst [vmem:[%s286 + $0x20] sm:$0xff] %v638
        %711 = vst [vmem:[%s286 + $0x28] sm:$0xff] %v640
        %712 = vst [vmem:[%s286 + $0x30] sm:$0xff] %v642
        %713 = vst [vmem:[%s286 + $0x38] sm:$0xff] %v644
        %714 = vst [vmem:[%s286 + $0x40] sm:$0xff] %v648
        %715 = vst [vmem:[%s286 + $0x48] sm:$0xff] %v650
        %716 = vst [vmem:[%s286 + $0x50] sm:$0xff] %v652
        %717 = vst [vmem:[%s286 + $0x58] sm:$0xff] %v654
        %718 = vst [vmem:[%s286 + $0x60] sm:$0xff] %v658
        %719 = vst [vmem:[%s286 + $0x68] sm:$0xff] %v660
        %720 = vst [vmem:[%s286 + $0x70] sm:$0xff] %v662
        %721 = vst [vmem:[%s286 + $0x78] sm:$0xff] %v664
        %722 = vst [vmem:[%s286 + $0x80] sm:$0xff] %v668
        %723 = vst [vmem:[%s286 + $0x88] sm:$0xff] %v670
        %724 = vst [vmem:[%s286 + $0x90] sm:$0xff] %v672
        %725 = vst [vmem:[%s286 + $0x98] sm:$0xff] %v674
        %726 = vst [vmem:[%s286 + $0xa0] sm:$0xff] %v678
        %727 = vst [vmem:[%s286 + $0xa8] sm:$0xff] %v680
        %728 = vst [vmem:[%s286 + $0xb0] sm:$0xff] %v682
        %729 = vst [vmem:[%s286 + $0xb8] sm:$0xff] %v684
        %730 = vst [vmem:[%s286 + $0xc0] sm:$0xff] %v688
        %731 = vst [vmem:[%s286 + $0xc8] sm:$0xff] %v690
        %732 = vst [vmem:[%s286 + $0xd0] sm:$0xff] %v692
        %733 = vst [vmem:[%s286 + $0xd8] sm:$0xff] %v694
        %734 = vst [vmem:[%s286 + $0xe0] sm:$0xff] %v698
        %735 = vst [vmem:[%s286 + $0xe8] sm:$0xff] %v700
        %736 = vst [vmem:[%s286 + $0xf0] sm:$0xff] %v702
        %737 = vst [vmem:[%s286 + $0xf8] sm:$0xff] %v704
        %v738 = vand.u32 2147483647, %v628
        %v739 = vand.u32 2147483647, %v630
        %v740 = vand.u32 2147483647, %v632
        %v741 = vand.u32 2147483647, %v634
        %v742 = vand.u32 2147483647, %v638
        %v743 = vand.u32 2147483647, %v640
        %v744 = vand.u32 2147483647, %v642
        %v745 = vand.u32 2147483647, %v644
        %v746 = vand.u32 2147483647, %v648
        %v747 = vand.u32 2147483647, %v650
        %v748 = vand.u32 2147483647, %v652
        %v749 = vand.u32 2147483647, %v654
        %v750 = vand.u32 2147483647, %v658
        %v751 = vand.u32 2147483647, %v660
        %v752 = vand.u32 2147483647, %v662
        %v753 = vand.u32 2147483647, %v664
        %v754 = vand.u32 2147483647, %v668
        %v755 = vand.u32 2147483647, %v670
        %v756 = vand.u32 2147483647, %v672
        %v757 = vand.u32 2147483647, %v674
        %v758 = vand.u32 2147483647, %v678
        %v759 = vand.u32 2147483647, %v680
        %v760 = vand.u32 2147483647, %v682
        %v761 = vand.u32 2147483647, %v684
        %v762 = vand.u32 2147483647, %v688
        %v763 = vand.u32 2147483647, %v690
        %v764 = vand.u32 2147483647, %v692
        %v765 = vand.u32 2147483647, %v694
        %v766 = vand.u32 2147483647, %v698
        %v767 = vand.u32 2147483647, %v700
        %v768 = vand.u32 2147483647, %v702
        %v769 = vand.u32 2147483647, %v704
        %vm770 = vcmp.gt.f32.partialorder %v738, 0.0
        %vm771 = vcmp.gt.f32.partialorder %v739, 0.0
        %vm772 = vcmp.gt.f32.partialorder %v740, 0.0
        %vm773 = vcmp.gt.f32.partialorder %v741, 0.0
        %vm774 = vcmp.gt.f32.partialorder %v742, 0.0
        %vm775 = vcmp.gt.f32.partialorder %v743, 0.0
        %vm776 = vcmp.gt.f32.partialorder %v744, 0.0
        %vm777 = vcmp.gt.f32.partialorder %v745, 0.0
        %vm778 = vcmp.gt.f32.partialorder %v746, 0.0
        %vm779 = vcmp.gt.f32.partialorder %v747, 0.0
        %vm780 = vcmp.gt.f32.partialorder %v748, 0.0
        %vm781 = vcmp.gt.f32.partialorder %v749, 0.0
        %vm782 = vcmp.gt.f32.partialorder %v750, 0.0
        %vm783 = vcmp.gt.f32.partialorder %v751, 0.0
        %vm784 = vcmp.gt.f32.partialorder %v752, 0.0
        %vm785 = vcmp.gt.f32.partialorder %v753, 0.0
        %vm786 = vcmp.gt.f32.partialorder %v754, 0.0
        %vm787 = vcmp.gt.f32.partialorder %v755, 0.0
        %vm788 = vcmp.gt.f32.partialorder %v756, 0.0
        %vm789 = vcmp.gt.f32.partialorder %v757, 0.0
        %vm790 = vcmp.gt.f32.partialorder %v758, 0.0
        %vm791 = vcmp.gt.f32.partialorder %v759, 0.0
        %vm792 = vcmp.gt.f32.partialorder %v760, 0.0
        %vm793 = vcmp.gt.f32.partialorder %v761, 0.0
        %vm794 = vcmp.gt.f32.partialorder %v762, 0.0
        %vm795 = vcmp.gt.f32.partialorder %v763, 0.0
        %vm796 = vcmp.gt.f32.partialorder %v764, 0.0
        %vm797 = vcmp.gt.f32.partialorder %v765, 0.0
        %vm798 = vcmp.gt.f32.partialorder %v766, 0.0
        %vm799 = vcmp.gt.f32.partialorder %v767, 0.0
        %vm800 = vcmp.gt.f32.partialorder %v768, 0.0
        %vm801 = vcmp.gt.f32.partialorder %v769, 0.0
        %v802 = vmax.f32 %v738, 1e-30
        %v803 = vmax.f32 %v739, 1e-30
        %v804 = vmax.f32 %v740, 1e-30
        %v805 = vmax.f32 %v741, 1e-30
        %v806 = vmax.f32 %v742, 1e-30
        %v807 = vmax.f32 %v743, 1e-30
        %v808 = vmax.f32 %v744, 1e-30
        %v809 = vmax.f32 %v745, 1e-30
        %v810 = vmax.f32 %v746, 1e-30
        %v811 = vmax.f32 %v747, 1e-30
        %v812 = vmax.f32 %v748, 1e-30
        %v813 = vmax.f32 %v749, 1e-30
        %v814 = vmax.f32 %v750, 1e-30
        %v815 = vmax.f32 %v751, 1e-30
        %v816 = vmax.f32 %v752, 1e-30
        %v817 = vmax.f32 %v753, 1e-30
        %v818 = vmax.f32 %v754, 1e-30
        %v819 = vmax.f32 %v755, 1e-30
        %v820 = vmax.f32 %v756, 1e-30
        %v821 = vmax.f32 %v757, 1e-30
        %v822 = vmax.f32 %v758, 1e-30
        %v823 = vmax.f32 %v759, 1e-30
        %v824 = vmax.f32 %v760, 1e-30
        %v825 = vmax.f32 %v761, 1e-30
        %v826 = vmax.f32 %v762, 1e-30
        %v827 = vmax.f32 %v763, 1e-30
        %v828 = vmax.f32 %v764, 1e-30
        %v829 = vmax.f32 %v765, 1e-30
        %v830 = vmax.f32 %v766, 1e-30
        %v831 = vmax.f32 %v767, 1e-30
        %v832 = vmax.f32 %v768, 1e-30
        %v833 = vmax.f32 %v769, 1e-30
        %v834 = vlog2.pop %v802
        %v835 = vmul.f32 %v834, 0.6931472
        %v836 = vlog2.pop %v803
        %v837 = vmul.f32 %v836, 0.6931472
        %v838 = vlog2.pop %v804
        %v839 = vmul.f32 %v838, 0.6931472
        %v840 = vlog2.pop %v805
        %v841 = vmul.f32 %v840, 0.6931472
        %v842 = vlog2.pop %v806
        %v843 = vmul.f32 %v842, 0.6931472
        %v844 = vlog2.pop %v807
        %v845 = vmul.f32 %v844, 0.6931472
        %v846 = vlog2.pop %v808
        %v847 = vmul.f32 %v846, 0.6931472
        %v848 = vlog2.pop %v809
        %v849 = vmul.f32 %v848, 0.6931472
        %v850 = vlog2.pop %v810
        %v851 = vmul.f32 %v850, 0.6931472
        %v852 = vlog2.pop %v811
        %v853 = vmul.f32 %v852, 0.6931472
        %v854 = vlog2.pop %v812
        %v855 = vmul.f32 %v854, 0.6931472
        %v856 = vlog2.pop %v813
        %v857 = vmul.f32 %v856, 0.6931472
        %v858 = vlog2.pop %v814
        %v859 = vmul.f32 %v858, 0.6931472
        %v860 = vlog2.pop %v815
        %v861 = vmul.f32 %v860, 0.6931472
        %v862 = vlog2.pop %v816
        %v863 = vmul.f32 %v862, 0.6931472
        %v864 = vlog2.pop %v817
        %v865 = vmul.f32 %v864, 0.6931472
        %v866 = vlog2.pop %v818
        %v867 = vmul.f32 %v866, 0.6931472
        %v868 = vlog2.pop %v819
        %v869 = vmul.f32 %v868, 0.6931472
        %v870 = vlog2.pop %v820
        %v871 = vmul.f32 %v870, 0.6931472
        %v872 = vlog2.pop %v821
        %v873 = vmul.f32 %v872, 0.6931472
        %v874 = vlog2.pop %v822
        %v875 = vmul.f32 %v874, 0.6931472
        %v876 = vlog2.pop %v823
        %v877 = vmul.f32 %v876, 0.6931472
        %v878 = vlog2.pop %v824
        %v879 = vmul.f32 %v878, 0.6931472
        %v880 = vlog2.pop %v825
        %v881 = vmul.f32 %v880, 0.6931472
        %v882 = vlog2.pop %v826
        %v883 = vmul.f32 %v882, 0.6931472
        %v884 = vlog2.pop %v827
        %v885 = vmul.f32 %v884, 0.6931472
        %v886 = vlog2.pop %v828
        %v887 = vmul.f32 %v886, 0.6931472
        %v888 = vlog2.pop %v829
        %v889 = vmul.f32 %v888, 0.6931472
        %v890 = vlog2.pop %v830
        %v891 = vmul.f32 %v890, 0.6931472
        %v892 = vlog2.pop %v831
        %v893 = vmul.f32 %v892, 0.6931472
        %v894 = vlog2.pop %v832
        %v895 = vmul.f32 %v894, 0.6931472
        %v896 = vlog2.pop %v833
        %v897 = vmul.f32 %v896, 0.6931472
        %v898 = vmul.f32 %v835, 0.6
        %v899 = vmul.f32 %v837, 0.6
        %v900 = vmul.f32 %v839, 0.6
        %v901 = vmul.f32 %v841, 0.6
        %v902 = vmul.f32 %v843, 0.6
        %v903 = vmul.f32 %v845, 0.6
        %v904 = vmul.f32 %v847, 0.6
        %v905 = vmul.f32 %v849, 0.6
        %v906 = vmul.f32 %v851, 0.6
        %v907 = vmul.f32 %v853, 0.6
        %v908 = vmul.f32 %v855, 0.6
        %v909 = vmul.f32 %v857, 0.6
        %v910 = vmul.f32 %v859, 0.6
        %v911 = vmul.f32 %v861, 0.6
        %v912 = vmul.f32 %v863, 0.6
        %v913 = vmul.f32 %v865, 0.6
        %v914 = vmul.f32 %v867, 0.6
        %v915 = vmul.f32 %v869, 0.6
        %v916 = vmul.f32 %v871, 0.6
        %v917 = vmul.f32 %v873, 0.6
        %v918 = vmul.f32 %v875, 0.6
        %v919 = vmul.f32 %v877, 0.6
        %v920 = vmul.f32 %v879, 0.6
        %v921 = vmul.f32 %v881, 0.6
        %v922 = vmul.f32 %v883, 0.6
        %v923 = vmul.f32 %v885, 0.6
        %v924 = vmul.f32 %v887, 0.6
        %v925 = vmul.f32 %v889, 0.6
        %v926 = vmul.f32 %v891, 0.6
        %v927 = vmul.f32 %v893, 0.6
        %v928 = vmul.f32 %v895, 0.6
        %v929 = vmul.f32 %v897, 0.6
        %v930 = vmul.f32 %v898, 1.442695
        %v931 = vpow.pop %v930
        %v932 = vmul.f32 %v899, 1.442695
        %v933 = vpow.pop %v932
        %v934 = vmul.f32 %v900, 1.442695
        %v935 = vpow.pop %v934
        %v936 = vmul.f32 %v901, 1.442695
        %v937 = vpow.pop %v936
        %v938 = vmul.f32 %v902, 1.442695
        %v939 = vpow.pop %v938
        %v940 = vmul.f32 %v903, 1.442695
        %v941 = vpow.pop %v940
        %v942 = vmul.f32 %v904, 1.442695
        %v943 = vpow.pop %v942
        %v944 = vmul.f32 %v905, 1.442695
        %v945 = vpow.pop %v944
        %v946 = vmul.f32 %v906, 1.442695
        %v947 = vpow.pop %v946
        %v948 = vmul.f32 %v907, 1.442695
        %v949 = vpow.pop %v948
        %v950 = vmul.f32 %v908, 1.442695
        %v951 = vpow.pop %v950
        %v952 = vmul.f32 %v909, 1.442695
        %v953 = vpow.pop %v952
        %v954 = vmul.f32 %v910, 1.442695
        %v955 = vpow.pop %v954
        %v956 = vmul.f32 %v911, 1.442695
        %v957 = vpow.pop %v956
        %v958 = vmul.f32 %v912, 1.442695
        %v959 = vpow.pop %v958
        %v960 = vmul.f32 %v913, 1.442695
        %v961 = vpow.pop %v960
        %v962 = vmul.f32 %v914, 1.442695
        %v963 = vpow.pop %v962
        %v964 = vmul.f32 %v915, 1.442695
        %v965 = vpow.pop %v964
        %v966 = vmul.f32 %v916, 1.442695
        %v967 = vpow.pop %v966
        %v968 = vmul.f32 %v917, 1.442695
        %v969 = vpow.pop %v968
        %v970 = vmul.f32 %v918, 1.442695
        %v971 = vpow.pop %v970
        %v972 = vmul.f32 %v919, 1.442695
        %v973 = vpow.pop %v972
        %v974 = vmul.f32 %v920, 1.442695
        %v975 = vpow.pop %v974
        %v976 = vmul.f32 %v921, 1.442695
        %v977 = vpow.pop %v976
        %v978 = vmul.f32 %v922, 1.442695
        %v979 = vpow.pop %v978
        %v980 = vmul.f32 %v923, 1.442695
        %v981 = vpow.pop %v980
        %v982 = vmul.f32 %v924, 1.442695
        %v983 = vpow.pop %v982
        %v984 = vmul.f32 %v925, 1.442695
        %v985 = vpow.pop %v984
        %v986 = vmul.f32 %v926, 1.442695
        %v987 = vpow.pop %v986
        %v988 = vmul.f32 %v927, 1.442695
        %v989 = vpow.pop %v988
        %v990 = vmul.f32 %v928, 1.442695
        %v991 = vpow.pop %v990
        %v992 = vmul.f32 %v929, 1.442695
        %v993 = vpow.pop %v992
        %v994 = vsel %vm770, %v931, 0.0
        %v995 = vsel %vm771, %v933, 0.0
        %v996 = vsel %vm772, %v935, 0.0
        %v997 = vsel %vm773, %v937, 0.0
        %v998 = vsel %vm774, %v939, 0.0
        %v999 = vsel %vm775, %v941, 0.0
        %v1000 = vsel %vm776, %v943, 0.0
        %v1001 = vsel %vm777, %v945, 0.0
        %v1002 = vsel %vm778, %v947, 0.0
        %v1003 = vsel %vm779, %v949, 0.0
        %v1004 = vsel %vm780, %v951, 0.0
        %v1005 = vsel %vm781, %v953, 0.0
        %v1006 = vsel %vm782, %v955, 0.0
        %v1007 = vsel %vm783, %v957, 0.0
        %v1008 = vsel %vm784, %v959, 0.0
        %v1009 = vsel %vm785, %v961, 0.0
        %v1010 = vsel %vm786, %v963, 0.0
        %v1011 = vsel %vm787, %v965, 0.0
        %v1012 = vsel %vm788, %v967, 0.0
        %v1013 = vsel %vm789, %v969, 0.0
        %v1014 = vsel %vm790, %v971, 0.0
        %v1015 = vsel %vm791, %v973, 0.0
        %v1016 = vsel %vm792, %v975, 0.0
        %v1017 = vsel %vm793, %v977, 0.0
        %v1018 = vsel %vm794, %v979, 0.0
        %v1019 = vsel %vm795, %v981, 0.0
        %v1020 = vsel %vm796, %v983, 0.0
        %v1021 = vsel %vm797, %v985, 0.0
        %v1022 = vsel %vm798, %v987, 0.0
        %v1023 = vsel %vm799, %v989, 0.0
        %v1024 = vsel %vm800, %v991, 0.0
        %v1025 = vsel %vm801, %v993, 0.0
        %vm1026 = vcmp.lt.f32.partialorder %v628, 0.0
        %vm1027 = vcmp.lt.f32.partialorder %v630, 0.0
        %vm1028 = vcmp.lt.f32.partialorder %v632, 0.0
        %vm1029 = vcmp.lt.f32.partialorder %v634, 0.0
        %vm1030 = vcmp.lt.f32.partialorder %v638, 0.0
        %vm1031 = vcmp.lt.f32.partialorder %v640, 0.0
        %vm1032 = vcmp.lt.f32.partialorder %v642, 0.0
        %vm1033 = vcmp.lt.f32.partialorder %v644, 0.0
        %vm1034 = vcmp.lt.f32.partialorder %v648, 0.0
        %vm1035 = vcmp.lt.f32.partialorder %v650, 0.0
        %vm1036 = vcmp.lt.f32.partialorder %v652, 0.0
        %vm1037 = vcmp.lt.f32.partialorder %v654, 0.0
        %vm1038 = vcmp.lt.f32.partialorder %v658, 0.0
        %vm1039 = vcmp.lt.f32.partialorder %v660, 0.0
        %vm1040 = vcmp.lt.f32.partialorder %v662, 0.0
        %vm1041 = vcmp.lt.f32.partialorder %v664, 0.0
        %vm1042 = vcmp.lt.f32.partialorder %v668, 0.0
        %vm1043 = vcmp.lt.f32.partialorder %v670, 0.0
        %vm1044 = vcmp.lt.f32.partialorder %v672, 0.0
        %vm1045 = vcmp.lt.f32.partialorder %v674, 0.0
        %vm1046 = vcmp.lt.f32.partialorder %v678, 0.0
        %vm1047 = vcmp.lt.f32.partialorder %v680, 0.0
        %vm1048 = vcmp.lt.f32.partialorder %v682, 0.0
        %vm1049 = vcmp.lt.f32.partialorder %v684, 0.0
        %vm1050 = vcmp.lt.f32.partialorder %v688, 0.0
        %vm1051 = vcmp.lt.f32.partialorder %v690, 0.0
        %vm1052 = vcmp.lt.f32.partialorder %v692, 0.0
        %vm1053 = vcmp.lt.f32.partialorder %v694, 0.0
        %vm1054 = vcmp.lt.f32.partialorder %v698, 0.0
        %vm1055 = vcmp.lt.f32.partialorder %v700, 0.0
        %vm1056 = vcmp.lt.f32.partialorder %v702, 0.0
        %vm1057 = vcmp.lt.f32.partialorder %v704, 0.0
        %v1058 = vsub.f32 0.0, %v994
        %v1059 = vsub.f32 0.0, %v995
        %v1060 = vsub.f32 0.0, %v996
        %v1061 = vsub.f32 0.0, %v997
        %v1062 = vsub.f32 0.0, %v998
        %v1063 = vsub.f32 0.0, %v999
        %v1064 = vsub.f32 0.0, %v1000
        %v1065 = vsub.f32 0.0, %v1001
        %v1066 = vsub.f32 0.0, %v1002
        %v1067 = vsub.f32 0.0, %v1003
        %v1068 = vsub.f32 0.0, %v1004
        %v1069 = vsub.f32 0.0, %v1005
        %v1070 = vsub.f32 0.0, %v1006
        %v1071 = vsub.f32 0.0, %v1007
        %v1072 = vsub.f32 0.0, %v1008
        %v1073 = vsub.f32 0.0, %v1009
        %v1074 = vsub.f32 0.0, %v1010
        %v1075 = vsub.f32 0.0, %v1011
        %v1076 = vsub.f32 0.0, %v1012
        %v1077 = vsub.f32 0.0, %v1013
        %v1078 = vsub.f32 0.0, %v1014
        %v1079 = vsub.f32 0.0, %v1015
        %v1080 = vsub.f32 0.0, %v1016
        %v1081 = vsub.f32 0.0, %v1017
        %v1082 = vsub.f32 0.0, %v1018
        %v1083 = vsub.f32 0.0, %v1019
        %v1084 = vsub.f32 0.0, %v1020
        %v1085 = vsub.f32 0.0, %v1021
        %v1086 = vsub.f32 0.0, %v1022
        %v1087 = vsub.f32 0.0, %v1023
        %v1088 = vsub.f32 0.0, %v1024
        %v1089 = vsub.f32 0.0, %v1025
        %v1090 = vsel %vm1026, %v1058, %v994
        %v1091 = vsel %vm1027, %v1059, %v995
        %v1092 = vsel %vm1028, %v1060, %v996
        %v1093 = vsel %vm1029, %v1061, %v997
        %v1094 = vsel %vm1030, %v1062, %v998
        %v1095 = vsel %vm1031, %v1063, %v999
        %v1096 = vsel %vm1032, %v1064, %v1000
        %v1097 = vsel %vm1033, %v1065, %v1001
        %v1098 = vsel %vm1034, %v1066, %v1002
        %v1099 = vsel %vm1035, %v1067, %v1003
        %v1100 = vsel %vm1036, %v1068, %v1004
        %v1101 = vsel %vm1037, %v1069, %v1005
        %v1102 = vsel %vm1038, %v1070, %v1006
        %v1103 = vsel %vm1039, %v1071, %v1007
        %v1104 = vsel %vm1040, %v1072, %v1008
        %v1105 = vsel %vm1041, %v1073, %v1009
        %v1106 = vsel %vm1042, %v1074, %v1010
        %v1107 = vsel %vm1043, %v1075, %v1011
        %v1108 = vsel %vm1044, %v1076, %v1012
        %v1109 = vsel %vm1045, %v1077, %v1013
        %v1110 = vsel %vm1046, %v1078, %v1014
        %v1111 = vsel %vm1047, %v1079, %v1015
        %v1112 = vsel %vm1048, %v1080, %v1016
        %v1113 = vsel %vm1049, %v1081, %v1017
        %v1114 = vsel %vm1050, %v1082, %v1018
        %v1115 = vsel %vm1051, %v1083, %v1019
        %v1116 = vsel %vm1052, %v1084, %v1020
        %v1117 = vsel %vm1053, %v1085, %v1021
        %v1118 = vsel %vm1054, %v1086, %v1022
        %v1119 = vsel %vm1055, %v1087, %v1023
        %v1120 = vsel %vm1056, %v1088, %v1024
        %v1121 = vsel %vm1057, %v1089, %v1025
        %v1122 = vpack.c.bf16 %v996, %v994
        %v1123 = vpack.c.bf16 %v997, %v995
        %v1124 = vpack.c.bf16 %v1000, %v998
        %v1125 = vpack.c.bf16 %v1001, %v999
        %v1126 = vpack.c.bf16 %v1004, %v1002
        %v1127 = vpack.c.bf16 %v1005, %v1003
        %v1128 = vpack.c.bf16 %v1008, %v1006
        %v1129 = vpack.c.bf16 %v1009, %v1007
        %v1130 = vpack.c.bf16 %v1012, %v1010
        %v1131 = vpack.c.bf16 %v1013, %v1011
        %v1132 = vpack.c.bf16 %v1016, %v1014
        %v1133 = vpack.c.bf16 %v1017, %v1015
        %v1134 = vpack.c.bf16 %v1020, %v1018
        %v1135 = vpack.c.bf16 %v1021, %v1019
        %v1136 = vpack.c.bf16 %v1024, %v1022
        %v1137 = vpack.c.bf16 %v1025, %v1023
        %v1138 = vld [vmem:[%s254] sm:$0xff]
        %v1139 = vld [vmem:[%s254 + $0x8] sm:$0xff]
        %v1140 = vld [vmem:[%s254 + $0x10] sm:$0xff]
        %v1141 = vld [vmem:[%s254 + $0x18] sm:$0xff]
        %v1142 = vld [vmem:[%s254 + $0x20] sm:$0xff]
        %v1143 = vld [vmem:[%s254 + $0x28] sm:$0xff]
        %v1144 = vld [vmem:[%s254 + $0x30] sm:$0xff]
        %v1145 = vld [vmem:[%s254 + $0x38] sm:$0xff]
        %v1146 = vld [vmem:[%s254 + $0x40] sm:$0xff]
        %v1147 = vld [vmem:[%s254 + $0x48] sm:$0xff]
        %v1148 = vld [vmem:[%s254 + $0x50] sm:$0xff]
        %v1149 = vld [vmem:[%s254 + $0x58] sm:$0xff]
        %v1150 = vld [vmem:[%s254 + $0x60] sm:$0xff]
        %v1151 = vld [vmem:[%s254 + $0x68] sm:$0xff]
        %v1152 = vld [vmem:[%s254 + $0x70] sm:$0xff]
        %v1153 = vld [vmem:[%s254 + $0x78] sm:$0xff]
        %v1154 = vld [vmem:[%s254 + $0x80] sm:$0xff]
        %v1155 = vld [vmem:[%s254 + $0x88] sm:$0xff]
        %v1156 = vld [vmem:[%s254 + $0x90] sm:$0xff]
        %v1157 = vld [vmem:[%s254 + $0x98] sm:$0xff]
        %v1158 = vld [vmem:[%s254 + $0xa0] sm:$0xff]
        %v1159 = vld [vmem:[%s254 + $0xa8] sm:$0xff]
        %v1160 = vld [vmem:[%s254 + $0xb0] sm:$0xff]
        %v1161 = vld [vmem:[%s254 + $0xb8] sm:$0xff]
        %v1162 = vld [vmem:[%s254 + $0xc0] sm:$0xff]
        %v1163 = vld [vmem:[%s254 + $0xc8] sm:$0xff]
        %v1164 = vld [vmem:[%s254 + $0xd0] sm:$0xff]
        %v1165 = vld [vmem:[%s254 + $0xd8] sm:$0xff]
        %v1166 = vld [vmem:[%s254 + $0xe0] sm:$0xff]
        %v1167 = vld [vmem:[%s254 + $0xe8] sm:$0xff]
        %v1168 = vld [vmem:[%s254 + $0xf0] sm:$0xff]
        %v1169 = vld [vmem:[%s254 + $0xf8] sm:$0xff]
        %v1202 = vunpack.c.l.b16 %v1138
        %v1203 = vunpack.c.h.b16 %v1138
        %v1204 = vunpack.c.l.b16 %v1139
        %v1205 = vunpack.c.h.b16 %v1139
        %v1206 = vunpack.c.l.b16 %v1140
        %v1207 = vunpack.c.h.b16 %v1140
        %v1208 = vunpack.c.l.b16 %v1141
        %v1209 = vunpack.c.h.b16 %v1141
        %v1210 = vunpack.c.l.b16 %v1142
        %v1211 = vunpack.c.h.b16 %v1142
        %v1212 = vunpack.c.l.b16 %v1143
        %v1213 = vunpack.c.h.b16 %v1143
        %v1214 = vunpack.c.l.b16 %v1144
        %v1215 = vunpack.c.h.b16 %v1144
        %v1216 = vunpack.c.l.b16 %v1145
        %v1217 = vunpack.c.h.b16 %v1145
        %v1218 = vunpack.c.l.b16 %v1146
        %v1219 = vunpack.c.h.b16 %v1146
        %v1220 = vunpack.c.l.b16 %v1147
        %v1221 = vunpack.c.h.b16 %v1147
        %v1222 = vunpack.c.l.b16 %v1148
        %v1223 = vunpack.c.h.b16 %v1148
        %v1224 = vunpack.c.l.b16 %v1149
        %v1225 = vunpack.c.h.b16 %v1149
        %v1226 = vunpack.c.l.b16 %v1150
        %v1227 = vunpack.c.h.b16 %v1150
        %v1228 = vunpack.c.l.b16 %v1151
        %v1229 = vunpack.c.h.b16 %v1151
        %v1230 = vunpack.c.l.b16 %v1152
        %v1231 = vunpack.c.h.b16 %v1152
        %v1232 = vunpack.c.l.b16 %v1153
        %v1233 = vunpack.c.h.b16 %v1153
        %v1234 = vunpack.c.l.b16 %v1154
        %v1235 = vunpack.c.h.b16 %v1154
        %v1236 = vunpack.c.l.b16 %v1155
        %v1237 = vunpack.c.h.b16 %v1155
        %v1238 = vunpack.c.l.b16 %v1156
        %v1239 = vunpack.c.h.b16 %v1156
        %v1240 = vunpack.c.l.b16 %v1157
        %v1241 = vunpack.c.h.b16 %v1157
        %v1242 = vunpack.c.l.b16 %v1158
        %v1243 = vunpack.c.h.b16 %v1158
        %v1244 = vunpack.c.l.b16 %v1159
        %v1245 = vunpack.c.h.b16 %v1159
        %v1246 = vunpack.c.l.b16 %v1160
        %v1247 = vunpack.c.h.b16 %v1160
        %v1248 = vunpack.c.l.b16 %v1161
        %v1249 = vunpack.c.h.b16 %v1161
        %v1250 = vunpack.c.l.b16 %v1162
        %v1251 = vunpack.c.h.b16 %v1162
        %v1252 = vunpack.c.l.b16 %v1163
        %v1253 = vunpack.c.h.b16 %v1163
        %v1254 = vunpack.c.l.b16 %v1164
        %v1255 = vunpack.c.h.b16 %v1164
        %v1256 = vunpack.c.l.b16 %v1165
        %v1257 = vunpack.c.h.b16 %v1165
        %v1258 = vunpack.c.l.b16 %v1166
        %v1259 = vunpack.c.h.b16 %v1166
        %v1260 = vunpack.c.l.b16 %v1167
        %v1261 = vunpack.c.h.b16 %v1167
        %v1262 = vunpack.c.l.b16 %v1168
        %v1263 = vunpack.c.h.b16 %v1168
        %v1264 = vunpack.c.l.b16 %v1169
        %v1265 = vunpack.c.h.b16 %v1169
        %v1266 = vpack.c.b16 %v1204, %v1202
        %v1267 = vpack.c.b16 %v1205, %v1203
        %v1268 = vpack.c.b16 %v1208, %v1206
        %v1269 = vpack.c.b16 %v1209, %v1207
        %v1270 = vpack.c.b16 %v1212, %v1210
        %v1271 = vpack.c.b16 %v1213, %v1211
        %v1272 = vpack.c.b16 %v1216, %v1214
        %v1273 = vpack.c.b16 %v1217, %v1215
        %v1274 = vpack.c.b16 %v1220, %v1218
        %v1275 = vpack.c.b16 %v1221, %v1219
        %v1276 = vpack.c.b16 %v1224, %v1222
        %v1277 = vpack.c.b16 %v1225, %v1223
        %v1278 = vpack.c.b16 %v1228, %v1226
        %v1279 = vpack.c.b16 %v1229, %v1227
        %v1280 = vpack.c.b16 %v1232, %v1230
        %v1281 = vpack.c.b16 %v1233, %v1231
        %v1282 = vpack.c.b16 %v1236, %v1234
        %v1283 = vpack.c.b16 %v1237, %v1235
        %v1284 = vpack.c.b16 %v1240, %v1238
        %v1285 = vpack.c.b16 %v1241, %v1239
        %v1286 = vpack.c.b16 %v1244, %v1242
        %v1287 = vpack.c.b16 %v1245, %v1243
        %v1288 = vpack.c.b16 %v1248, %v1246
        %v1289 = vpack.c.b16 %v1249, %v1247
        %v1290 = vpack.c.b16 %v1252, %v1250
        %v1291 = vpack.c.b16 %v1253, %v1251
        %v1292 = vpack.c.b16 %v1256, %v1254
        %v1293 = vpack.c.b16 %v1257, %v1255
        %v1294 = vpack.c.b16 %v1260, %v1258
        %v1295 = vpack.c.b16 %v1261, %v1259
        %v1296 = vpack.c.b16 %v1264, %v1262
        %v1297 = vpack.c.b16 %v1265, %v1263
        %1330 = vmatprep.subr.bf16.mxu0 %v1281
        %1331 = vmatpush1.bf16.msra.mxu0 %v1280
        %1332 = vmatprep.subr.bf16.mxu0 %v1279
        %1333 = vmatpush1.bf16.msra.mxu0 %v1278
        %1334 = vmatprep.subr.bf16.mxu0 %v1277
        %1335 = vmatpush1.bf16.msra.mxu0 %v1276
        %1336 = vmatprep.subr.bf16.mxu0 %v1275
        %1337 = vmatpush1.bf16.msra.mxu0 %v1274
        %1338 = vmatprep.subr.bf16.mxu0 %v1273
        %1339 = vmatpush1.bf16.msra.mxu0 %v1272
        %1340 = vmatprep.subr.bf16.mxu0 %v1271
        %1341 = vmatpush1.bf16.msra.mxu0 %v1270
        %1342 = vmatprep.subr.bf16.mxu0 %v1269
        %1343 = vmatpush1.bf16.msra.mxu0 %v1268
        %1344 = vmatprep.subr.bf16.mxu0 %v1267
        %1345 = vmatpush1.bf16.msra.mxu0 %v1266
        %1346 = vmatprep.subr.bf16.mxu0 %v1297
        %1347 = vmatpush2.bf16.msra.mxu0 %v1296
        %1348 = vmatprep.subr.bf16.mxu0 %v1295
        %1349 = vmatpush2.bf16.msra.mxu0 %v1294
        %1350 = vmatprep.subr.bf16.mxu0 %v1293
        %1351 = vmatpush2.bf16.msra.mxu0 %v1292
        %1352 = vmatprep.subr.bf16.mxu0 %v1291
        %1353 = vmatpush2.bf16.msra.mxu0 %v1290
        %1354 = vmatprep.subr.bf16.mxu0 %v1289
        %1355 = vmatpush2.bf16.msra.mxu0 %v1288
        %1356 = vmatprep.subr.bf16.mxu0 %v1287
        %1357 = vmatpush2.bf16.msra.mxu0 %v1286
        %1358 = vmatprep.subr.bf16.mxu0 %v1285
        %1359 = vmatpush2.bf16.msra.mxu0 %v1284
        %1360 = vmatprep.subr.bf16.mxu0 %v1283
        %1361 = vmatpush2.bf16.msra.mxu0 %v1282
        %1362 = vmatprep.mubr.bf16.mxu0 %v1123
        %1363 = vmatmul.mubr.bf16.gmra.mxu0 %v1122
        %v1364 = vpop.f32.mrf.mxu0
        %v1365 = vadd.f32 500.0, %v1364
        %v1366 = vpop.f32.mrf.mxu0
        %v1367 = vadd.f32 500.0, %v1366
        %v1368 = vpop.f32.mrf.mxu0
        %v1369 = vadd.f32 500.0, %v1368
        %v1370 = vpop.f32.mrf.mxu0
        %v1371 = vadd.f32 500.0, %v1370
        %1372 = vmatprep.mubr.bf16.mxu0 %v1125
        %1373 = vmatmul.mubr.bf16.gmra.mxu0 %v1124
        %v1374 = vpop.f32.mrf.mxu0
        %v1375 = vadd.f32 500.0, %v1374
        %v1376 = vpop.f32.mrf.mxu0
        %v1377 = vadd.f32 500.0, %v1376
        %v1378 = vpop.f32.mrf.mxu0
        %v1379 = vadd.f32 500.0, %v1378
        %v1380 = vpop.f32.mrf.mxu0
        %v1381 = vadd.f32 500.0, %v1380
        %1382 = vmatprep.mubr.bf16.mxu0 %v1127
        %1383 = vmatmul.mubr.bf16.gmra.mxu0 %v1126
        %v1384 = vpop.f32.mrf.mxu0
        %v1385 = vadd.f32 500.0, %v1384
        %v1386 = vpop.f32.mrf.mxu0
        %v1387 = vadd.f32 500.0, %v1386
        %v1388 = vpop.f32.mrf.mxu0
        %v1389 = vadd.f32 500.0, %v1388
        %v1390 = vpop.f32.mrf.mxu0
        %v1391 = vadd.f32 500.0, %v1390
        %1392 = vmatprep.mubr.bf16.mxu0 %v1129
        %1393 = vmatmul.mubr.bf16.gmra.mxu0 %v1128
        %v1394 = vpop.f32.mrf.mxu0
        %v1395 = vadd.f32 500.0, %v1394
        %v1396 = vpop.f32.mrf.mxu0
        %v1397 = vadd.f32 500.0, %v1396
        %v1398 = vpop.f32.mrf.mxu0
        %v1399 = vadd.f32 500.0, %v1398
        %v1400 = vpop.f32.mrf.mxu0
        %v1401 = vadd.f32 500.0, %v1400
        %1402 = vmatprep.mubr.bf16.mxu0 %v1131
        %1403 = vmatmul.mubr.bf16.gmra.mxu0 %v1130
        %v1404 = vpop.f32.mrf.mxu0
        %v1405 = vadd.f32 500.0, %v1404
        %v1406 = vpop.f32.mrf.mxu0
        %v1407 = vadd.f32 500.0, %v1406
        %v1408 = vpop.f32.mrf.mxu0
        %v1409 = vadd.f32 500.0, %v1408
        %v1410 = vpop.f32.mrf.mxu0
        %v1411 = vadd.f32 500.0, %v1410
        %1412 = vmatprep.mubr.bf16.mxu0 %v1133
        %1413 = vmatmul.mubr.bf16.gmra.mxu0 %v1132
        %v1414 = vpop.f32.mrf.mxu0
        %v1415 = vadd.f32 500.0, %v1414
        %v1416 = vpop.f32.mrf.mxu0
        %v1417 = vadd.f32 500.0, %v1416
        %v1418 = vpop.f32.mrf.mxu0
        %v1419 = vadd.f32 500.0, %v1418
        %v1420 = vpop.f32.mrf.mxu0
        %v1421 = vadd.f32 500.0, %v1420
        %1422 = vmatprep.mubr.bf16.mxu0 %v1135
        %1423 = vmatmul.mubr.bf16.gmra.mxu0 %v1134
        %v1424 = vpop.f32.mrf.mxu0
        %v1425 = vadd.f32 500.0, %v1424
        %v1426 = vpop.f32.mrf.mxu0
        %v1427 = vadd.f32 500.0, %v1426
        %v1428 = vpop.f32.mrf.mxu0
        %v1429 = vadd.f32 500.0, %v1428
        %v1430 = vpop.f32.mrf.mxu0
        %v1431 = vadd.f32 500.0, %v1430
        %1432 = vmatprep.mubr.bf16.mxu0 %v1137
        %1433 = vmatmul.mubr.bf16.gmra.mxu0 %v1136
        %v1434 = vpop.f32.mrf.mxu0
        %v1435 = vadd.f32 500.0, %v1434
        %v1436 = vpop.f32.mrf.mxu0
        %v1437 = vadd.f32 500.0, %v1436
        %v1438 = vpop.f32.mrf.mxu0
        %v1439 = vadd.f32 500.0, %v1438
        %v1440 = vpop.f32.mrf.mxu0
        %v1441 = vadd.f32 500.0, %v1440
        %1442 = vdwg.mxu0
        %v1443 = vrcp.pop %v1365
        %v1444 = vrcp.pop %v1367
        %v1445 = vrcp.pop %v1369
        %v1446 = vrcp.pop %v1371
        %v1447 = vrcp.pop %v1375
        %v1448 = vrcp.pop %v1377
        %v1449 = vrcp.pop %v1379
        %v1450 = vrcp.pop %v1381
        %v1451 = vrcp.pop %v1385
        %v1452 = vrcp.pop %v1387
        %v1453 = vrcp.pop %v1389
        %v1454 = vrcp.pop %v1391
        %v1455 = vrcp.pop %v1395
        %v1456 = vrcp.pop %v1397
        %v1457 = vrcp.pop %v1399
        %v1458 = vrcp.pop %v1401
        %v1459 = vrcp.pop %v1405
        %v1460 = vrcp.pop %v1407
        %v1461 = vrcp.pop %v1409
        %v1462 = vrcp.pop %v1411
        %v1463 = vrcp.pop %v1415
        %v1464 = vrcp.pop %v1417
        %v1465 = vrcp.pop %v1419
        %v1466 = vrcp.pop %v1421
        %v1467 = vrcp.pop %v1425
        %v1468 = vrcp.pop %v1427
        %v1469 = vrcp.pop %v1429
        %v1470 = vrcp.pop %v1431
        %v1471 = vrcp.pop %v1435
        %v1472 = vrcp.pop %v1437
        %v1473 = vrcp.pop %v1439
        %v1474 = vrcp.pop %v1441
        %v1475 = vmul.f32 %v1090, %v1443
        %v1476 = vmul.f32 %v1091, %v1444
        %v1477 = vmul.f32 %v1092, %v1445
        %v1478 = vmul.f32 %v1093, %v1446
        %v1479 = vmul.f32 %v1094, %v1447
        %v1480 = vmul.f32 %v1095, %v1448
        %v1481 = vmul.f32 %v1096, %v1449
        %v1482 = vmul.f32 %v1097, %v1450
        %v1483 = vmul.f32 %v1098, %v1451
        %v1484 = vmul.f32 %v1099, %v1452
        %v1485 = vmul.f32 %v1100, %v1453
        %v1486 = vmul.f32 %v1101, %v1454
        %v1487 = vmul.f32 %v1102, %v1455
        %v1488 = vmul.f32 %v1103, %v1456
        %v1489 = vmul.f32 %v1104, %v1457
        %v1490 = vmul.f32 %v1105, %v1458
        %v1491 = vmul.f32 %v1106, %v1459
        %v1492 = vmul.f32 %v1107, %v1460
        %v1493 = vmul.f32 %v1108, %v1461
        %v1494 = vmul.f32 %v1109, %v1462
        %v1495 = vmul.f32 %v1110, %v1463
        %v1496 = vmul.f32 %v1111, %v1464
        %v1497 = vmul.f32 %v1112, %v1465
        %v1498 = vmul.f32 %v1113, %v1466
        %v1499 = vmul.f32 %v1114, %v1467
        %v1500 = vmul.f32 %v1115, %v1468
        %v1501 = vmul.f32 %v1116, %v1469
        %v1502 = vmul.f32 %v1117, %v1470
        %v1503 = vmul.f32 %v1118, %v1471
        %v1504 = vmul.f32 %v1119, %v1472
        %v1505 = vmul.f32 %v1120, %v1473
        %v1506 = vmul.f32 %v1121, %v1474
        %1507 = vst [vmem:[%s292] sm:$0xff] %v1475
        %1508 = vst [vmem:[%s292 + $0x8] sm:$0xff] %v1476
        %1509 = vst [vmem:[%s292 + $0x10] sm:$0xff] %v1477
        %1510 = vst [vmem:[%s292 + $0x18] sm:$0xff] %v1478
        %1511 = vst [vmem:[%s292 + $0x20] sm:$0xff] %v1479
        %1512 = vst [vmem:[%s292 + $0x28] sm:$0xff] %v1480
        %1513 = vst [vmem:[%s292 + $0x30] sm:$0xff] %v1481
        %1514 = vst [vmem:[%s292 + $0x38] sm:$0xff] %v1482
        %1515 = vst [vmem:[%s292 + $0x40] sm:$0xff] %v1483
        %1516 = vst [vmem:[%s292 + $0x48] sm:$0xff] %v1484
        %1517 = vst [vmem:[%s292 + $0x50] sm:$0xff] %v1485
        %1518 = vst [vmem:[%s292 + $0x58] sm:$0xff] %v1486
        %1519 = vst [vmem:[%s292 + $0x60] sm:$0xff] %v1487
        %1520 = vst [vmem:[%s292 + $0x68] sm:$0xff] %v1488
        %1521 = vst [vmem:[%s292 + $0x70] sm:$0xff] %v1489
        %1522 = vst [vmem:[%s292 + $0x78] sm:$0xff] %v1490
        %1523 = vst [vmem:[%s292 + $0x80] sm:$0xff] %v1491
        %1524 = vst [vmem:[%s292 + $0x88] sm:$0xff] %v1492
        %1525 = vst [vmem:[%s292 + $0x90] sm:$0xff] %v1493
        %1526 = vst [vmem:[%s292 + $0x98] sm:$0xff] %v1494
        %1527 = vst [vmem:[%s292 + $0xa0] sm:$0xff] %v1495
        %1528 = vst [vmem:[%s292 + $0xa8] sm:$0xff] %v1496
        %1529 = vst [vmem:[%s292 + $0xb0] sm:$0xff] %v1497
        %1530 = vst [vmem:[%s292 + $0xb8] sm:$0xff] %v1498
        %1531 = vst [vmem:[%s292 + $0xc0] sm:$0xff] %v1499
        %1532 = vst [vmem:[%s292 + $0xc8] sm:$0xff] %v1500
        %1533 = vst [vmem:[%s292 + $0xd0] sm:$0xff] %v1501
        %1534 = vst [vmem:[%s292 + $0xd8] sm:$0xff] %v1502
        %1535 = vst [vmem:[%s292 + $0xe0] sm:$0xff] %v1503
        %1536 = vst [vmem:[%s292 + $0xe8] sm:$0xff] %v1504
        %1537 = vst [vmem:[%s292 + $0xf0] sm:$0xff] %v1505
        %1538 = vst [vmem:[%s292 + $0xf8] sm:$0xff] %v1506
        %s1539 = sand.u32 %s122, 1
        %s1540 = sand.u32 %s122, 1
        %s1541 = smul.addr %s1540, 256
        %s1542 = scalar_lea.vmem [#allocation6], %s1541
        %s1543 = sand.u32 %s150, 1
        %s1544 = sand.u32 %s150, 1
        %s1545 = smul.addr %s1544, 256
        %s1546 = scalar_lea.vmem [#allocation7], %s1545
        // Predicated region
        $region41: #{layer4_forward.1} parent=31 // pred_check
          %p1547 = pneg %p132
        $region42: #{layer4_forward.1} parent=31 // pred_check_branch
          %1549 = sbr.rel (%p1547) target = $region44
        $region43: #{layer4_forward.1} parent=31 // pred_region
          %s1550 = smul.u32 16, %s26
          %s1551 = smul.u32 2, %s27
          %s1552 = smul.addr %s1550, 14
          %s1553 = sadd.s32 %s1551, %s1552
          %s1554 = smul.addr %s1553, 8
          %s1555 = scalar_lea.vmem %s3, %s1554
          // Predicated region
          $region45: #{layer4_forward.1} parent=43 // pred_check
            _
          $region46: #{layer4_forward.1} parent=43 // pred_check_branch
            %1557 = sbr.rel (0) target = $region48
          $region47: #{layer4_forward.1} parent=43 // pred_region
            // Predicated region
            $region49: #{layer4_forward.1} parent=47 // pred_check
              _
            $region50: #{layer4_forward.1} parent=47 // pred_check_branch
              %1559 = sbr.rel (0) target = $region52
            $region51: #{layer4_forward.1} parent=47 // pred_region
              loop: start=0, step=1, limit=1
              $region53: #{layer4_forward.1} parent=51 // loop_pre_header
                _
              $region54: #{layer4_forward.1} parent=51 // loop_header
                %s1561 = sphi 0, %s1565
                %p1562 = scmp.ge.s32.totalorder %s1561, 1
                %s1566 = sphi %s1542, %s1542
                %s1567 = sphi %s1555, %s1555
              $region55: #{layer4_forward.1} parent=51 // loop_header_branch
                %1564 = sbr.rel (%p1562) target = $region59
              $region56: #{layer4_forward.1} parent=51 // loop_body
                %v1568 = vld [vmem:[%s1566] sm:$0xff]
                %1569 = vst [vmem:[%s1567] sm:$0xff] %v1568
                %v1570 = vld [vmem:[%s1566 + $0x8] sm:$0xff]
                %1571 = vst [vmem:[%s1567 + $0x8] sm:$0xff] %v1570
                %v1572 = vld [vmem:[%s1566 + $0x10] sm:$0xff]
                %1573 = vst [vmem:[%s1567 + $0x70] sm:$0xff] %v1572
                %v1574 = vld [vmem:[%s1566 + $0x18] sm:$0xff]
                %1575 = vst [vmem:[%s1567 + $0x78] sm:$0xff] %v1574
                %v1576 = vld [vmem:[%s1566 + $0x20] sm:$0xff]
                %1577 = vst [vmem:[%s1567 + $0xe0] sm:$0xff] %v1576
                %v1578 = vld [vmem:[%s1566 + $0x28] sm:$0xff]
                %1579 = vst [vmem:[%s1567 + $0xe8] sm:$0xff] %v1578
                %v1580 = vld [vmem:[%s1566 + $0x30] sm:$0xff]
                %1581 = vst [vmem:[%s1567 + $0x150] sm:$0xff] %v1580
                %v1582 = vld [vmem:[%s1566 + $0x38] sm:$0xff]
                %1583 = vst [vmem:[%s1567 + $0x158] sm:$0xff] %v1582
                %v1584 = vld [vmem:[%s1566 + $0x40] sm:$0xff]
                %1585 = vst [vmem:[%s1567 + $0x1c0] sm:$0xff] %v1584
                %v1586 = vld [vmem:[%s1566 + $0x48] sm:$0xff]
                %1587 = vst [vmem:[%s1567 + $0x1c8] sm:$0xff] %v1586
                %v1588 = vld [vmem:[%s1566 + $0x50] sm:$0xff]
                %1589 = vst [vmem:[%s1567 + $0x230] sm:$0xff] %v1588
                %v1590 = vld [vmem:[%s1566 + $0x58] sm:$0xff]
                %1591 = vst [vmem:[%s1567 + $0x238] sm:$0xff] %v1590
                %v1592 = vld [vmem:[%s1566 + $0x60] sm:$0xff]
                %1593 = vst [vmem:[%s1567 + $0x2a0] sm:$0xff] %v1592
                %v1594 = vld [vmem:[%s1566 + $0x68] sm:$0xff]
                %1595 = vst [vmem:[%s1567 + $0x2a8] sm:$0xff] %v1594
                %v1596 = vld [vmem:[%s1566 + $0x70] sm:$0xff]
                %1597 = vst [vmem:[%s1567 + $0x310] sm:$0xff] %v1596
                %v1598 = vld [vmem:[%s1566 + $0x78] sm:$0xff]
                %1599 = vst [vmem:[%s1567 + $0x318] sm:$0xff] %v1598
                %v1600 = vld [vmem:[%s1566 + $0x80] sm:$0xff]
                %1601 = vst [vmem:[%s1567 + $0x380] sm:$0xff] %v1600
                %v1602 = vld [vmem:[%s1566 + $0x88] sm:$0xff]
                %1603 = vst [vmem:[%s1567 + $0x388] sm:$0xff] %v1602
                %v1604 = vld [vmem:[%s1566 + $0x90] sm:$0xff]
                %1605 = vst [vmem:[%s1567 + $0x3f0] sm:$0xff] %v1604
                %v1606 = vld [vmem:[%s1566 + $0x98] sm:$0xff]
                %1607 = vst [vmem:[%s1567 + $0x3f8] sm:$0xff] %v1606
                %v1608 = vld [vmem:[%s1566 + $0xa0] sm:$0xff]
                %1609 = vst [vmem:[%s1567 + $0x460] sm:$0xff] %v1608
                %v1610 = vld [vmem:[%s1566 + $0xa8] sm:$0xff]
                %1611 = vst [vmem:[%s1567 + $0x468] sm:$0xff] %v1610
                %v1612 = vld [vmem:[%s1566 + $0xb0] sm:$0xff]
                %1613 = vst [vmem:[%s1567 + $0x4d0] sm:$0xff] %v1612
                %v1614 = vld [vmem:[%s1566 + $0xb8] sm:$0xff]
                %1615 = vst [vmem:[%s1567 + $0x4d8] sm:$0xff] %v1614
                %v1616 = vld [vmem:[%s1566 + $0xc0] sm:$0xff]
                %1617 = vst [vmem:[%s1567 + $0x540] sm:$0xff] %v1616
                %v1618 = vld [vmem:[%s1566 + $0xc8] sm:$0xff]
                %1619 = vst [vmem:[%s1567 + $0x548] sm:$0xff] %v1618
                %v1620 = vld [vmem:[%s1566 + $0xd0] sm:$0xff]
                %1621 = vst [vmem:[%s1567 + $0x5b0] sm:$0xff] %v1620
                %v1622 = vld [vmem:[%s1566 + $0xd8] sm:$0xff]
                %1623 = vst [vmem:[%s1567 + $0x5b8] sm:$0xff] %v1622
                %v1624 = vld [vmem:[%s1566 + $0xe0] sm:$0xff]
                %1625 = vst [vmem:[%s1567 + $0x620] sm:$0xff] %v1624
                %v1626 = vld [vmem:[%s1566 + $0xe8] sm:$0xff]
                %1627 = vst [vmem:[%s1567 + $0x628] sm:$0xff] %v1626
                %v1628 = vld [vmem:[%s1566 + $0xf0] sm:$0xff]
                %1629 = vst [vmem:[%s1567 + $0x690] sm:$0xff] %v1628
                %v1630 = vld [vmem:[%s1566 + $0xf8] sm:$0xff]
                %1631 = vst [vmem:[%s1567 + $0x698] sm:$0xff] %v1630
              $region57: #{layer4_forward.1} parent=51 // loop_footer
                %s1565 = sadd.s32 1, %s1561
              $region58: #{layer4_forward.1} parent=51 // loop_footer_branch
                %1560 = sbr.rel target = $region54
              $region59: #{layer4_forward.1} parent=51 // loop_exit
                _
            $region52: #{layer4_forward.1} parent=47 // pred_fallthru
              _
            // Predicated region
            $region60: #{layer4_forward.1} parent=47 // pred_check
              _
            $region61: #{layer4_forward.1} parent=47 // pred_check_branch
              %1633 = sbr.rel target = $region63
            $region62: #{layer4_forward.1} parent=47 // pred_region
              _
            $region63: #{layer4_forward.1} parent=47 // pred_fallthru
              _
          $region48: #{layer4_forward.1} parent=43 // pred_fallthru
            _
          %1634 = vnop
        $region44: #{layer4_forward.1} parent=31 // pred_fallthru
          _
        // Predicated region
        $region64: #{layer4_forward.1} parent=31 // pred_check
          %p1635 = pneg %p160
        $region65: #{layer4_forward.1} parent=31 // pred_check_branch
          %1637 = sbr.rel (%p1635) target = $region67
        $region66: #{layer4_forward.1} parent=31 // pred_region
          %s1638 = smul.u32 16, %s26
          %s1639 = smul.u32 2, %s27
          %s1640 = smul.addr %s1638, 14
          %s1641 = sadd.s32 %s1639, %s1640
          %s1642 = smul.addr %s1641, 8
          %s1643 = scalar_lea.vmem %s4, %s1642
          // Predicated region
          $region68: #{layer4_forward.1} parent=66 // pred_check
            _
          $region69: #{layer4_forward.1} parent=66 // pred_check_branch
            %1645 = sbr.rel (0) target = $region71
          $region70: #{layer4_forward.1} parent=66 // pred_region
            // Predicated region
            $region72: #{layer4_forward.1} parent=70 // pred_check
              _
            $region73: #{layer4_forward.1} parent=70 // pred_check_branch
              %1647 = sbr.rel (0) target = $region75
            $region74: #{layer4_forward.1} parent=70 // pred_region
              loop: start=0, step=1, limit=1
              $region76: #{layer4_forward.1} parent=74 // loop_pre_header
                _
              $region77: #{layer4_forward.1} parent=74 // loop_header
                %s1649 = sphi 0, %s1653
                %p1650 = scmp.ge.s32.totalorder %s1649, 1
                %s1654 = sphi %s1546, %s1546
                %s1655 = sphi %s1643, %s1643
              $region78: #{layer4_forward.1} parent=74 // loop_header_branch
                %1652 = sbr.rel (%p1650) target = $region82
              $region79: #{layer4_forward.1} parent=74 // loop_body
                %v1656 = vld [vmem:[%s1654] sm:$0xff]
                %1657 = vst [vmem:[%s1655] sm:$0xff] %v1656
                %v1658 = vld [vmem:[%s1654 + $0x8] sm:$0xff]
                %1659 = vst [vmem:[%s1655 + $0x8] sm:$0xff] %v1658
                %v1660 = vld [vmem:[%s1654 + $0x10] sm:$0xff]
                %1661 = vst [vmem:[%s1655 + $0x70] sm:$0xff] %v1660
                %v1662 = vld [vmem:[%s1654 + $0x18] sm:$0xff]
                %1663 = vst [vmem:[%s1655 + $0x78] sm:$0xff] %v1662
                %v1664 = vld [vmem:[%s1654 + $0x20] sm:$0xff]
                %1665 = vst [vmem:[%s1655 + $0xe0] sm:$0xff] %v1664
                %v1666 = vld [vmem:[%s1654 + $0x28] sm:$0xff]
                %1667 = vst [vmem:[%s1655 + $0xe8] sm:$0xff] %v1666
                %v1668 = vld [vmem:[%s1654 + $0x30] sm:$0xff]
                %1669 = vst [vmem:[%s1655 + $0x150] sm:$0xff] %v1668
                %v1670 = vld [vmem:[%s1654 + $0x38] sm:$0xff]
                %1671 = vst [vmem:[%s1655 + $0x158] sm:$0xff] %v1670
                %v1672 = vld [vmem:[%s1654 + $0x40] sm:$0xff]
                %1673 = vst [vmem:[%s1655 + $0x1c0] sm:$0xff] %v1672
                %v1674 = vld [vmem:[%s1654 + $0x48] sm:$0xff]
                %1675 = vst [vmem:[%s1655 + $0x1c8] sm:$0xff] %v1674
                %v1676 = vld [vmem:[%s1654 + $0x50] sm:$0xff]
                %1677 = vst [vmem:[%s1655 + $0x230] sm:$0xff] %v1676
                %v1678 = vld [vmem:[%s1654 + $0x58] sm:$0xff]
                %1679 = vst [vmem:[%s1655 + $0x238] sm:$0xff] %v1678
                %v1680 = vld [vmem:[%s1654 + $0x60] sm:$0xff]
                %1681 = vst [vmem:[%s1655 + $0x2a0] sm:$0xff] %v1680
                %v1682 = vld [vmem:[%s1654 + $0x68] sm:$0xff]
                %1683 = vst [vmem:[%s1655 + $0x2a8] sm:$0xff] %v1682
                %v1684 = vld [vmem:[%s1654 + $0x70] sm:$0xff]
                %1685 = vst [vmem:[%s1655 + $0x310] sm:$0xff] %v1684
                %v1686 = vld [vmem:[%s1654 + $0x78] sm:$0xff]
                %1687 = vst [vmem:[%s1655 + $0x318] sm:$0xff] %v1686
                %v1688 = vld [vmem:[%s1654 + $0x80] sm:$0xff]
                %1689 = vst [vmem:[%s1655 + $0x380] sm:$0xff] %v1688
                %v1690 = vld [vmem:[%s1654 + $0x88] sm:$0xff]
                %1691 = vst [vmem:[%s1655 + $0x388] sm:$0xff] %v1690
                %v1692 = vld [vmem:[%s1654 + $0x90] sm:$0xff]
                %1693 = vst [vmem:[%s1655 + $0x3f0] sm:$0xff] %v1692
                %v1694 = vld [vmem:[%s1654 + $0x98] sm:$0xff]
                %1695 = vst [vmem:[%s1655 + $0x3f8] sm:$0xff] %v1694
                %v1696 = vld [vmem:[%s1654 + $0xa0] sm:$0xff]
                %1697 = vst [vmem:[%s1655 + $0x460] sm:$0xff] %v1696
                %v1698 = vld [vmem:[%s1654 + $0xa8] sm:$0xff]
                %1699 = vst [vmem:[%s1655 + $0x468] sm:$0xff] %v1698
                %v1700 = vld [vmem:[%s1654 + $0xb0] sm:$0xff]
                %1701 = vst [vmem:[%s1655 + $0x4d0] sm:$0xff] %v1700
                %v1702 = vld [vmem:[%s1654 + $0xb8] sm:$0xff]
                %1703 = vst [vmem:[%s1655 + $0x4d8] sm:$0xff] %v1702
                %v1704 = vld [vmem:[%s1654 + $0xc0] sm:$0xff]
                %1705 = vst [vmem:[%s1655 + $0x540] sm:$0xff] %v1704
                %v1706 = vld [vmem:[%s1654 + $0xc8] sm:$0xff]
                %1707 = vst [vmem:[%s1655 + $0x548] sm:$0xff] %v1706
                %v1708 = vld [vmem:[%s1654 + $0xd0] sm:$0xff]
                %1709 = vst [vmem:[%s1655 + $0x5b0] sm:$0xff] %v1708
                %v1710 = vld [vmem:[%s1654 + $0xd8] sm:$0xff]
                %1711 = vst [vmem:[%s1655 + $0x5b8] sm:$0xff] %v1710
                %v1712 = vld [vmem:[%s1654 + $0xe0] sm:$0xff]
                %1713 = vst [vmem:[%s1655 + $0x620] sm:$0xff] %v1712
                %v1714 = vld [vmem:[%s1654 + $0xe8] sm:$0xff]
                %1715 = vst [vmem:[%s1655 + $0x628] sm:$0xff] %v1714
                %v1716 = vld [vmem:[%s1654 + $0xf0] sm:$0xff]
                %1717 = vst [vmem:[%s1655 + $0x690] sm:$0xff] %v1716
                %v1718 = vld [vmem:[%s1654 + $0xf8] sm:$0xff]
                %1719 = vst [vmem:[%s1655 + $0x698] sm:$0xff] %v1718
              $region80: #{layer4_forward.1} parent=74 // loop_footer
                %s1653 = sadd.s32 1, %s1649
              $region81: #{layer4_forward.1} parent=74 // loop_footer_branch
                %1648 = sbr.rel target = $region77
              $region82: #{layer4_forward.1} parent=74 // loop_exit
                _
            $region75: #{layer4_forward.1} parent=70 // pred_fallthru
              _
            // Predicated region
            $region83: #{layer4_forward.1} parent=70 // pred_check
              _
            $region84: #{layer4_forward.1} parent=70 // pred_check_branch
              %1721 = sbr.rel target = $region86
            $region85: #{layer4_forward.1} parent=70 // pred_region
              _
            $region86: #{layer4_forward.1} parent=70 // pred_fallthru
              _
          $region71: #{layer4_forward.1} parent=66 // pred_fallthru
            _
          %1722 = vnop
        $region67: #{layer4_forward.1} parent=31 // pred_fallthru
          _
      $region32: #{layer4_forward.1} parent=5 // pred_fallthru
        _
      %p1723 = scmp.le.s32.totalorder 2, %s17
      // Predicated region
      $region87: #{layer4_forward.1} parent=5 // pred_check
        %p1724 = pneg %p1723
      $region88: #{layer4_forward.1} parent=5 // pred_check_branch
        %1726 = sbr.rel (%p1724) target = $region90
      $region89: #{layer4_forward.1} parent=5 // pred_region
        %s1727 = ssub.s32 %s17, 2
        // Predicated region
        $region91: #{layer4_forward.1} parent=89 // pred_check
          %p1728 = pneg %p138
        $region92: #{layer4_forward.1} parent=89 // pred_check_branch
          %1730 = sbr.rel (%p1728) target = $region94
        $region93: #{layer4_forward.1} parent=89 // pred_region
          %s1731 = sand.u32 %s123, 1
          %s1732 = sand.u32 %s123, 1
          %s1733 = smul.addr %s1732, 256
          %s1734 = scalar_lea.vmem [#allocation6], %s1733
        $region94: #{layer4_forward.1} parent=89 // pred_fallthru
          _
        // Predicated region
        $region95: #{layer4_forward.1} parent=89 // pred_check
          %p1735 = pneg %p166
        $region96: #{layer4_forward.1} parent=89 // pred_check_branch
          %1737 = sbr.rel (%p1735) target = $region98
        $region97: #{layer4_forward.1} parent=89 // pred_region
          %s1738 = sand.u32 %s151, 1
          %s1739 = sand.u32 %s151, 1
          %s1740 = smul.addr %s1739, 256
          %s1741 = scalar_lea.vmem [#allocation7], %s1740
        $region98: #{layer4_forward.1} parent=89 // pred_fallthru
          _
      $region90: #{layer4_forward.1} parent=5 // pred_fallthru
        _
    $region6: #{layer4_forward.1} parent=1 // loop_footer
      %s21 = sadd.s32 1, %s17
    $region7: #{layer4_forward.1} parent=1 // loop_footer_branch
      %16 = sbr.rel target = $region3
    $region8: #{layer4_forward.1} parent=1 // loop_exit
      _
    %1742 = vsyncpa [#allocation3], 1
    %s1743 = scalar_lea.sflag [#allocation3], 1
    %1744 = vsyncpa %s1743, 1
    %1745 = vsyncpa [#allocation5], 1
    %s1746 = scalar_lea.sflag [#allocation5], 1
    %1747 = vsyncpa %s1746, 1

</llo_original>
